<compile_context>
chip_gen: v7x
topology: tpu7x:2x2x1
jax: 0.10.0
libtpu: 0.0.40
codegen_flags: <defaults>
</compile_context>

<pallas_src>
import functools

import jax
import jax.numpy as jnp
from jax.experimental import pallas as pl
from jax.experimental.pallas import tpu as pltpu

# ----------------------- model configuration (mit_b4 backbone + global tokens) ----
GT_NUM     = 10
EMBED_DIMS = [64, 128, 320, 512]
NUM_HEADS  = [1, 2, 5, 8]
MLP_RATIOS = [4, 4, 4, 4]
SR_RATIOS  = [8, 4, 2, 1]
DEPTHS     = [3, 8, 27, 3]
PATCH_CFGS = [(7, 4, 3), (3, 2, 1), (3, 2, 1), (3, 2, 1)]   # (kernel, stride, pad)

DTYPE      = jnp.bfloat16   # storage dtype for weights & activations
BLOCK_ROWS = 512            # row tile for matmul / LN kernels (fits v7x 32 MiB scoped VMEM)


def _row_tile(m):
    """Pick a row tile: full array if small, otherwise 512-row blocks (multiple of 8)."""
    if m <= BLOCK_ROWS:
        return m, 1
    return BLOCK_ROWS, pl.cdiv(m, BLOCK_ROWS)


def _parallel(n):
    return pltpu.CompilerParams(dimension_semantics=("parallel",) * n)


# ------------------------------------ Pallas kernels -------------------------------
def _layernorm_f32(x, g, b, eps):
    mu = jnp.mean(x, axis=-1, keepdims=True)
    xc = x - mu
    var = jnp.mean(xc * xc, axis=-1, keepdims=True)
    return xc * jax.lax.rsqrt(var + eps) * g + b


def _linear_kernel(x_ref, w_ref, b_ref, o_ref):
    acc = jnp.dot(x_ref[...], w_ref[...], preferred_element_type=jnp.float32)
    o_ref[...] = (acc + b_ref[...].astype(jnp.float32)).astype(o_ref.dtype)


def _linear_add_kernel(x_ref, w_ref, b_ref, r_ref, o_ref):
    acc = jnp.dot(x_ref[...], w_ref[...], preferred_element_type=jnp.float32)
    acc = acc + b_ref[...].astype(jnp.float32) + r_ref[...].astype(jnp.float32)
    o_ref[...] = acc.astype(o_ref.dtype)


def _ln_kernel(x_ref, g_ref, b_ref, o_ref, *, eps):
    y = _layernorm_f32(x_ref[...].astype(jnp.float32),
                       g_ref[...].astype(jnp.float32),
                       b_ref[...].astype(jnp.float32), eps)
    o_ref[...] = y.astype(o_ref.dtype)


def _ln_linear_kernel(x_ref, g_ref, bn_ref, w_ref, b_ref, o_ref, *, eps):
    """out = LN(x) @ W + b  (LN fused into the matmul prologue)."""
    xn = _layernorm_f32(x_ref[...].astype(jnp.float32),
                        g_ref[...].astype(jnp.float32),
                        bn_ref[...].astype(jnp.float32), eps)
    acc = jnp.dot(xn.astype(w_ref.dtype), w_ref[...],
                  preferred_element_type=jnp.float32)
    o_ref[...] = (acc + b_ref[...].astype(jnp.float32)).astype(o_ref.dtype)


def _linear_ln_kernel(x_ref, w_ref, b_ref, g_ref, bn_ref, o_ref, *, eps):
    """out = LN(x @ W + b)  (LN fused into the matmul epilogue)."""
    acc = jnp.dot(x_ref[...], w_ref[...], preferred_element_type=jnp.float32)
    acc = acc + b_ref[...].astype(jnp.float32)
    y = _layernorm_f32(acc, g_ref[...].astype(jnp.float32),
                       bn_ref[...].astype(jnp.float32), eps)
    o_ref[...] = y.astype(o_ref.dtype)


def linear(x, w, b):
    """y = x @ w + b.   x:(M,K)  w:(K,N)  b:(N,)"""
    M, K = x.shape
    N = w.shape[1]
    tm, g = _row_tile(M)
    return pl.pallas_call(
        _linear_kernel,
        grid=(g,),
        out_shape=jax.ShapeDtypeStruct((M, N), x.dtype),
        in_specs=[pl.BlockSpec((tm, K), lambda i: (i, 0)),
                  pl.BlockSpec((K, N), lambda i: (0, 0)),
                  pl.BlockSpec((1, N), lambda i: (0, 0))],
        out_specs=pl.BlockSpec((tm, N), lambda i: (i, 0)),
        compiler_params=_parallel(1),
    )(x, w, b.reshape(1, N))


def linear_add(x, w, b, res):
    """y = x @ w + b + res   (residual fused into the matmul epilogue)."""
    M, K = x.shape
    N = w.shape[1]
    tm, g = _row_tile(M)
    return pl.pallas_call(
        _linear_add_kernel,
        grid=(g,),
        out_shape=jax.ShapeDtypeStruct((M, N), x.dtype),
        in_specs=[pl.BlockSpec((tm, K), lambda i: (i, 0)),
                  pl.BlockSpec((K, N), lambda i: (0, 0)),
                  pl.BlockSpec((1, N), lambda i: (0, 0)),
                  pl.BlockSpec((tm, N), lambda i: (i, 0))],
        out_specs=pl.BlockSpec((tm, N), lambda i: (i, 0)),
        compiler_params=_parallel(1),
    )(x, w, b.reshape(1, N), res)


def layernorm2d(x, g, b, *, eps):
    """Row-tiled LayerNorm over the last axis of a 2-D array."""
    M, C = x.shape
    tm, gr = _row_tile(M)
    return pl.pallas_call(
        functools.partial(_ln_kernel, eps=eps),
        grid=(gr,),
        out_shape=jax.ShapeDtypeStruct((M, C), x.dtype),
        in_specs=[pl.BlockSpec((tm, C), lambda i: (i, 0)),
                  pl.BlockSpec((1, C), lambda i: (0, 0)),
                  pl.BlockSpec((1, C), lambda i: (0, 0))],
        out_specs=pl.BlockSpec((tm, C), lambda i: (i, 0)),
        compiler_params=_parallel(1),
    )(x, g.reshape(1, C), b.reshape(1, C))


def ln_linear(x, g, bn, w, b, *, eps):
    """y = LN(x) @ w + b."""
    M, K = x.shape
    N = w.shape[1]
    tm, gr = _row_tile(M)
    return pl.pallas_call(
        functools.partial(_ln_linear_kernel, eps=eps),
        grid=(gr,),
        out_shape=jax.ShapeDtypeStruct((M, N), x.dtype),
        in_specs=[pl.BlockSpec((tm, K), lambda i: (i, 0)),
                  pl.BlockSpec((1, K), lambda i: (0, 0)),
                  pl.BlockSpec((1, K), lambda i: (0, 0)),
                  pl.BlockSpec((K, N), lambda i: (0, 0)),
                  pl.BlockSpec((1, N), lambda i: (0, 0))],
        out_specs=pl.BlockSpec((tm, N), lambda i: (i, 0)),
        compiler_params=_parallel(1),
    )(x, g.reshape(1, K), bn.reshape(1, K), w, b.reshape(1, N))


def linear_ln(x, w, b, g, bn, *, eps):
    """y = LN(x @ w + b)."""
    M, K = x.shape
    N = w.shape[1]
    tm, gr = _row_tile(M)
    return pl.pallas_call(
        functools.partial(_linear_ln_kernel, eps=eps),
        grid=(gr,),
        out_shape=jax.ShapeDtypeStruct((M, N), x.dtype),
        in_specs=[pl.BlockSpec((tm, K), lambda i: (i, 0)),
                  pl.BlockSpec((K, N), lambda i: (0, 0)),
                  pl.BlockSpec((1, N), lambda i: (0, 0)),
                  pl.BlockSpec((1, N), lambda i: (0, 0)),
                  pl.BlockSpec((1, N), lambda i: (0, 0))],
        out_specs=pl.BlockSpec((tm, N), lambda i: (i, 0)),
        compiler_params=_parallel(1),
    )(x, w, b.reshape(1, N), g.reshape(1, N), bn.reshape(1, N))


# ---------------- attention kernels (heads sliced in-kernel, no HBM transposes) ----
def _attn_heads(q, k_src, v_src, nh, dh, scale, k_off, v_off, out_dtype):
    """q:(N,C) k_src/v_src:(M,*) bf16 value arrays; loop static heads, concat lane-dense."""
    outs = []
    for h in range(nh):
        qh = q[:, h * dh:(h + 1) * dh]
        kh = k_src[:, k_off + h * dh:k_off + (h + 1) * dh]
        vh = v_src[:, v_off + h * dh:v_off + (h + 1) * dh]
        s = jax.lax.dot_general(qh, kh, (((1,), (1,)), ((), ())),
                                preferred_element_type=jnp.float32) * scale
        s = s - jnp.max(s, axis=-1, keepdims=True)
        e = jnp.exp(s)
        p = e * pl.reciprocal(jnp.sum(e, axis=-1, keepdims=True), approx=True)
        outs.append(jnp.dot(p.astype(vh.dtype), vh, preferred_element_type=jnp.float32))
    return jnp.concatenate(outs, axis=-1).astype(out_dtype)


def _attn_split_kernel(q_ref, kv_ref, o_ref, *, nh, dh, scale):
    C = nh * dh
    o_ref[0] = _attn_heads(q_ref[0], kv_ref[0], kv_ref[0], nh, dh, scale,
                           k_off=0, v_off=C, out_dtype=o_ref.dtype)


def _attn_qkv_kernel(qkv_ref, o_ref, *, nh, dh, scale):
    C = nh * dh
    qkv = qkv_ref[0]
    o_ref[0] = _attn_heads(qkv[:, :C], qkv, qkv, nh, dh, scale,
                           k_off=C, v_off=2 * C, out_dtype=o_ref.dtype)


def attention_core_split(q, kv, *, num_heads, scale):
    """q:(B,N,C) kv:(B,M,2C) -> (B,N,C); grid over batch, heads handled in-kernel."""
    B, N, C = q.shape
    M = kv.shape[1]
    dh = C // num_heads
    return pl.pallas_call(
        functools.partial(_attn_split_kernel, nh=num_heads, dh=dh, scale=scale),
        grid=(B,),
        out_shape=jax.ShapeDtypeStruct((B, N, C), q.dtype),
        in_specs=[pl.BlockSpec((1, N, C), lambda b: (b, 0, 0)),
                  pl.BlockSpec((1, M, 2 * C), lambda b: (b, 0, 0))],
        out_specs=pl.BlockSpec((1, N, C), lambda b: (b, 0, 0)),
        compiler_params=_parallel(1),
    )(q, kv)


def attention_core_qkv(qkv, *, num_heads, scale):
    """Fused q/k/v input (B,N,3C) (sr_ratio == 1) -> (B,N,C)."""
    B, N, C3 = qkv.shape
    C = C3 // 3
    dh = C // num_heads
    return pl.pallas_call(
        functools.partial(_attn_qkv_kernel, nh=num_heads, dh=dh, scale=scale),
        grid=(B,),
        out_shape=jax.ShapeDtypeStruct((B, N, C), qkv.dtype),
        in_specs=[pl.BlockSpec((1, N, C3), lambda b: (b, 0, 0))],
        out_specs=pl.BlockSpec((1, N, C), lambda b: (b, 0, 0)),
        compiler_params=_parallel(1),
    )(qkv)


# --------------------------- depthwise 3x3 conv + GELU -----------------------------
# erf via Abramowitz & Stegun 7.1.26 (|err| < 1.5e-7) so GELU matches torch.nn.GELU
# (exact / erf-based) to ~f32 rounding without relying on a lax.erf lowering.
_ERF_P = 0.3275911
_ERF_A = (0.254829592, -0.284496736, 1.421413741, -1.453152027, 1.061405429)


def _erf(x):
    s = jnp.where(x >= 0.0, 1.0, -1.0)
    a = jnp.abs(x)
    t = 1.0 / (1.0 + _ERF_P * a)
    poly = t * (_ERF_A[0] + t * (_ERF_A[1] + t * (_ERF_A[2] + t * (_ERF_A[3] + t * _ERF_A[4]))))
    return s * (1.0 - poly * jnp.exp(-a * a))


def _gelu_exact(x):
    return 0.5 * x * (1.0 + _erf(x * 0.7071067811865476))


def _dwconv_gelu_kernel(x_ref, w_ref, b_ref, o_ref):
    H, W, C = o_ref.shape[1], o_ref.shape[2], o_ref.shape[3]
    acc = jnp.zeros((H, W, C), jnp.float32)
    for di in range(3):
        for dj in range(3):
            xs = x_ref[0, di:di + H, dj:dj + W, :].astype(jnp.float32)
            wk = w_ref[di * 3 + dj:di * 3 + dj + 1, :].astype(jnp.float32).reshape(1, 1, C)
            acc = acc + xs * wk
    acc = acc + b_ref[...].astype(jnp.float32).reshape(1, 1, C)
    o_ref[0] = _gelu_exact(acc).astype(o_ref.dtype)


def dwconv3x3_gelu(x, w, b, H, W):
    """Depthwise 3x3 conv (stride 1, pad 1, groups=C) + exact GELU.
    x:(B,H,W,C)  w:(9,C) kernel taps row-major  b:(C,)"""
    B, _, _, C = x.shape
    xp = jnp.pad(x, ((0, 0), (1, 1), (1, 1), (0, 0)))
    return pl.pallas_call(
        _dwconv_gelu_kernel,
        grid=(B,),
        out_shape=jax.ShapeDtypeStruct((B, H, W, C), x.dtype),
        in_specs=[pl.BlockSpec((1, H + 2, W + 2, C), lambda i: (i, 0, 0, 0)),
                  pl.BlockSpec((9, C), lambda i: (0, 0)),
                  pl.BlockSpec((1, C), lambda i: (0, 0))],
        out_specs=pl.BlockSpec((1, H, W, C), lambda i: (i, 0, 0, 0)),
        compiler_params=_parallel(1),
    )(xp, w, b.reshape(1, C))


# ------------------------------------ JAX glue --------------------------------------
def im2col(x, k, stride, pad):
    """x:(B,H,W,C) -> patches (B, Ho*Wo, k*k*C); tap order (di, dj, cin)."""
    B, H, W, C = x.shape
    if pad:
        x = jnp.pad(x, ((0, 0), (pad, pad), (pad, pad), (0, 0)))
    Ho = (H + 2 * pad - k) // stride + 1
    Wo = (W + 2 * pad - k) // stride + 1
    cols = []
    for di in range(k):
        for dj in range(k):
            cols.append(x[:, di:di + (Ho - 1) * stride + 1:stride,
                            dj:dj + (Wo - 1) * stride + 1:stride, :])
    patches = jnp.concatenate(cols, axis=-1)
    return patches.reshape(B, Ho * Wo, k * k * C), Ho, Wo


def attention_block(xn, gt, p, *, H, W, num_heads, sr_ratio, gt_num):
    """xn: norm1(x) image tokens (B,Nx,C); gt un-normalized (B,gt,C)."""
    B, Nx, C = xn.shape
    dh = C // num_heads
    scale = dh ** -0.5
    N = Nx + gt_num
    xf = jnp.concatenate([gt, xn], axis=1)                       # (B, N, C)

    if sr_ratio == 1:
        # fused q+kv projection -> single (C,3C) matmul, no HBM split afterwards
        qkv = linear(xf.reshape(B * N, C), p["qkv_w"], p["qkv_b"]).reshape(B, N, 3 * C)
        o = attention_core_qkv(qkv, num_heads=num_heads, scale=scale)
    else:
        q = linear(xf.reshape(B * N, C), p["q_w"], p["q_b"]).reshape(B, N, C)
        # sr conv (kernel=stride=sr, no pad) == matmul on non-overlapping patches,
        # with the LayerNorm fused into the matmul epilogue.
        patches, Hs, Ws = im2col(xn.reshape(B, H, W, C), sr_ratio, sr_ratio, 0)
        Ms = Hs * Ws
        xr = linear_ln(patches.reshape(B * Ms, sr_ratio * sr_ratio * C),
                       p["sr_w"], p["sr_b"], p["sr_ln_w"], p["sr_ln_b"],
                       eps=1e-5).reshape(B, Ms, C)
        xk = jnp.concatenate([gt, xr], axis=1)                   # (B, M, C)
        M = Ms + gt_num
        kv = linear(xk.reshape(B * M, C), p["kv_w"], p["kv_b"]).reshape(B, M, 2 * C)
        o = attention_core_split(q, kv, num_heads=num_heads, scale=scale)

    o = linear(o.reshape(B * N, C), p["proj_w"], p["proj_b"]).reshape(B, N, C)
    # attn_drop / proj_drop: identity (inference)
    return o[:, gt_num:, :], o[:, :gt_num, :]


@functools.partial(jax.jit, static_argnames=("H", "W", "num_heads", "sr_ratio", "gt_num"))
def run_block(x, gt, p, *, H, W, num_heads, sr_ratio, gt_num):
    B, Nx, C = x.shape
    xn = layernorm2d(x.reshape(B * Nx, C), p["norm1_w"], p["norm1_b"],
                     eps=1e-6).reshape(B, Nx, C)
    xa, gt_new = attention_block(xn, gt, p["attn"], H=H, W=W, num_heads=num_heads,
                                 sr_ratio=sr_ratio, gt_num=gt_num)
    x = x + xa                                                   # drop_path: identity
    # MLP: norm2 fused into fc1; fc2 fused with the residual add.
    mp = p["mlp"]
    hidden = mp["fc1_w"].shape[1]
    h = ln_linear(x.reshape(B * Nx, C), p["norm2_w"], p["norm2_b"],
                  mp["fc1_w"], mp["fc1_b"], eps=1e-6).reshape(B, H, W, hidden)
    h = dwconv3x3_gelu(h, mp["dw_w"], mp["dw_b"], H, W)
    x = linear_add(h.reshape(B * Nx, hidden), mp["fc2_w"], mp["fc2_b"],
                   x.reshape(B * Nx, C)).reshape(B, Nx, C)
    return x, gt_new


@functools.partial(jax.jit, static_argnames=("k", "stride", "pad"))
def run_patch_embed(x, p, *, k, stride, pad):
    patches, _, _ = im2col(x, k, stride, pad)
    B, M, KC = patches.shape
    C = p["proj_w"].shape[1]
    # conv-as-matmul with the patch-embed LayerNorm fused into the epilogue
    y = linear_ln(patches.reshape(B * M, KC), p["proj_w"], p["proj_b"],
                  p["norm_w"], p["norm_b"], eps=1e-5)
    return y.reshape(B, M, C)


@functools.partial(jax.jit, static_argnames=("H", "W"))
def run_stage_norm(x, w, b, *, H, W):
    B, N, C = x.shape
    y = layernorm2d(x.reshape(B * N, C), w, b, eps=1e-6).reshape(B, H, W, C)
    return y, y.transpose(0, 3, 1, 2).astype(jnp.float32)        # (NHWC for next stage, NCHW out)


def segformer_gt_gamma_forward(x_nchw, params):
    x = x_nchw.transpose(0, 2, 3, 1).astype(DTYPE)               # NCHW -> NHWC, bf16 internal
    B = x.shape[0]
    outs = []
    for s in range(4):
        k, stride, pad = PATCH_CFGS[s]
        H_in, W_in = x.shape[1], x.shape[2]
        Ho = (H_in + 2 * pad - k) // stride + 1
        Wo = (W_in + 2 * pad - k) // stride + 1
        tok = run_patch_embed(x, params["patch_embed"][s], k=k, stride=stride, pad=pad)
        gt2d = params["global_token"][s]
        gt = jnp.broadcast_to(gt2d[None], (B, GT_NUM, gt2d.shape[-1]))   # 'g c -> b g c'
        for bp in params["blocks"][s]:
            tok, gt = run_block(tok, gt, bp, H=Ho, W=Wo, num_heads=NUM_HEADS[s],
                                sr_ratio=SR_RATIOS[s], gt_num=GT_NUM)
        nhwc, out = run_stage_norm(tok, params["norm"][s][0], params["norm"][s][1], H=Ho, W=Wo)
        outs.append(out)
        x = nhwc                                                 # normalized NHWC feeds next stage
    return outs


# ------------------------------- deterministic parameters ---------------------------
def _normal(key, shape, std=0.02):
    return (jax.random.normal(key, shape, dtype=jnp.float32) * std).astype(DTYPE)


def _zeros(shape):
    return jnp.zeros(shape, DTYPE)


def _ones(shape):
    return jnp.ones(shape, DTYPE)


def init_params(key):
    keys = iter(jax.random.split(key, 4096))
    nk = lambda: next(keys)
    params = {"patch_embed": [], "blocks": [], "norm": [], "global_token": []}
    in_chans = 3
    for s in range(4):
        C = EMBED_DIMS[s]
        k, _, _ = PATCH_CFGS[s]
        params["patch_embed"].append({
            "proj_w": _normal(nk(), (k * k * in_chans, C)),       # conv-as-matmul weight
            "proj_b": _zeros((C,)),
            "norm_w": _ones((C,)),
            "norm_b": _zeros((C,)),
        })
        params["global_token"].append(
            jax.random.normal(nk(), (GT_NUM, C), jnp.float32).astype(DTYPE))
        hidden = C * MLP_RATIOS[s]
        sr = SR_RATIOS[s]
        blocks = []
        for _ in range(DEPTHS[s]):
            if sr > 1:
                attn_p = {
                    "q_w": _normal(nk(), (C, C)), "q_b": _zeros((C,)),
                    "kv_w": _normal(nk(), (C, 2 * C)), "kv_b": _zeros((2 * C,)),
                    "sr_w": _normal(nk(), (sr * sr * C, C)),      # sr-conv as matmul
                    "sr_b": _zeros((C,)),
                    "sr_ln_w": _ones((C,)), "sr_ln_b": _zeros((C,)),
                    "proj_w": _normal(nk(), (C, C)), "proj_b": _zeros((C,)),
                }
            else:
                attn_p = {                                        # fused q+kv projection
                    "qkv_w": _normal(nk(), (C, 3 * C)), "qkv_b": _zeros((3 * C,)),
                    "proj_w": _normal(nk(), (C, C)), "proj_b": _zeros((C,)),
                }
            mlp_p = {
                "fc1_w": _normal(nk(), (C, hidden)), "fc1_b": _zeros((hidden,)),
                "dw_w": _normal(nk(), (9, hidden)), "dw_b": _zeros((hidden,)),
                "fc2_w": _normal(nk(), (hidden, C)), "fc2_b": _zeros((C,)),
            }
            blocks.append({
                "norm1_w": _ones((C,)), "norm1_b": _zeros((C,)),
                "norm2_w": _ones((C,)), "norm2_b": _zeros((C,)),
                "attn": attn_p, "mlp": mlp_p,
            })
        params["blocks"].append(blocks)
        params["norm"].append((_ones((C,)), _zeros((C,))))
        in_chans = C
    return params


# ------------------------------------------ main ------------------------------------
if __name__ == "__main__":
    key = jax.random.PRNGKey(0)
    pkey, xkey = jax.random.split(key)
    params = init_params(pkey)
    # Small input, NCHW like the PyTorch module: (B=2, C=3, H=64, W=64)
    x = jax.random.normal(xkey, (2, 3, 64, 64), dtype=jnp.float32)

    outs = segformer_gt_gamma_forward(x, params)
    jax.block_until_ready(outs)

    expected = [(2, 64, 16, 16), (2, 128, 8, 8), (2, 320, 4, 4), (2, 512, 2, 2)]
    assert [tuple(o.shape) for o in outs] == expected, [tuple(o.shape) for o in outs]
    assert all(bool(jnp.all(jnp.isfinite(o))) for o in outs)
    print("KERNEL_OK")
</pallas_src>

<mosaic_0001>
module attributes {stable_mosaic.version = 11 : i64} {
  func.func @_linear_ln_kernel(%arg0: i32, %arg1: memref<512x147xbf16, #tpu.memory_space<vmem>>, %arg2: memref<147x64xbf16, #tpu.memory_space<vmem>>, %arg3: memref<1x64xbf16, #tpu.memory_space<vmem>>, %arg4: memref<1x64xbf16, #tpu.memory_space<vmem>>, %arg5: memref<1x64xbf16, #tpu.memory_space<vmem>>, %arg6: memref<512x64xbf16, #tpu.memory_space<vmem>>) attributes {dimension_semantics = [#tpu.dimension_semantics<parallel>], iteration_bounds = array<i64: 1>, scalar_prefetch = 0 : i64, scratch_operands = 0 : i64, tpu.core_type = #tpu.core_type<tc>, window_params = [{transform_indices = @transform_0, window_bounds = array<i64: 512, 147>}, {pipeline_mode = #tpu.pipeline_mode<synchronous>, transform_indices = @transform_1, window_bounds = array<i64: 147, 64>}, {pipeline_mode = #tpu.pipeline_mode<synchronous>, transform_indices = @transform_2, window_bounds = array<i64: 1, 64>}, {pipeline_mode = #tpu.pipeline_mode<synchronous>, transform_indices = @transform_3, window_bounds = array<i64: 1, 64>}, {pipeline_mode = #tpu.pipeline_mode<synchronous>, transform_indices = @transform_4, window_bounds = array<i64: 1, 64>}, {transform_indices = @transform_5, window_bounds = array<i64: 512, 64>}]} {
    %c0 = arith.constant 0 : index
    %c0_0 = arith.constant 0 : index
    %0 = vector.load %arg1[%c0, %c0_0] : memref<512x147xbf16, #tpu.memory_space<vmem>>, vector<512x147xbf16>
    %c0_1 = arith.constant 0 : index
    %c0_2 = arith.constant 0 : index
    %1 = vector.load %arg2[%c0_1, %c0_2] : memref<147x64xbf16, #tpu.memory_space<vmem>>, vector<147x64xbf16>
    %cst = arith.constant dense<0.000000e+00> : vector<512x64xf32>
    %2 = tpu.matmul %0, %1, %cst {dimension_numbers = #tpu.dot_dimension_numbers<[1], [0], [0], [1], [0, 0, 1, 1], [], []>} : vector<512x147xbf16>, vector<147x64xbf16>, vector<512x64xf32> -> vector<512x64xf32>
    %c0_3 = arith.constant 0 : index
    %c0_4 = arith.constant 0 : index
    %3 = vector.load %arg3[%c0_3, %c0_4] : memref<1x64xbf16, #tpu.memory_space<vmem>>, vector<1x64xbf16>
    %4 = arith.extf %3 : vector<1x64xbf16> to vector<1x64xf32>
    %5 = vector.broadcast %4 : vector<1x64xf32> to vector<512x64xf32>
    %6 = arith.addf %2, %5 : vector<512x64xf32>
    %c0_5 = arith.constant 0 : index
    %c0_6 = arith.constant 0 : index
    %7 = vector.load %arg4[%c0_5, %c0_6] : memref<1x64xbf16, #tpu.memory_space<vmem>>, vector<1x64xbf16>
    %8 = arith.extf %7 : vector<1x64xbf16> to vector<1x64xf32>
    %c0_7 = arith.constant 0 : index
    %c0_8 = arith.constant 0 : index
    %9 = vector.load %arg5[%c0_7, %c0_8] : memref<1x64xbf16, #tpu.memory_space<vmem>>, vector<1x64xbf16>
    %10 = arith.extf %9 : vector<1x64xbf16> to vector<1x64xf32>
    %cst_9 = arith.constant dense<0.000000e+00> : vector<512xf32>
    %11 = vector.multi_reduction <add>, %6, %cst_9 [1] : vector<512x64xf32> to vector<512xf32>
    %12 = vector.shape_cast %11 : vector<512xf32> to vector<512x1xf32>
    %cst_10 = arith.constant 6.400000e+01 : f32
    %13 = vector.broadcast %cst_10 : f32 to vector<512x1xf32>
    %14 = arith.divf %12, %13 : vector<512x1xf32>
    %15 = vector.broadcast %14 : vector<512x1xf32> to vector<512x64xf32>
    %16 = arith.subf %6, %15 : vector<512x64xf32>
    %17 = arith.mulf %16, %16 : vector<512x64xf32>
    %cst_11 = arith.constant dense<0.000000e+00> : vector<512xf32>
    %18 = vector.multi_reduction <add>, %17, %cst_11 [1] : vector<512x64xf32> to vector<512xf32>
    %19 = vector.shape_cast %18 : vector<512xf32> to vector<512x1xf32>
    %cst_12 = arith.constant 6.400000e+01 : f32
    %20 = vector.broadcast %cst_12 : f32 to vector<512x1xf32>
    %21 = arith.divf %19, %20 : vector<512x1xf32>
    %cst_13 = arith.constant 9.99999974E-6 : f32
    %22 = vector.broadcast %cst_13 : f32 to vector<512x1xf32>
    %23 = arith.addf %21, %22 : vector<512x1xf32>
    %24 = math.rsqrt %23 : vector<512x1xf32>
    %25 = vector.broadcast %24 : vector<512x1xf32> to vector<512x64xf32>
    %26 = arith.mulf %16, %25 : vector<512x64xf32>
    %27 = vector.broadcast %8 : vector<1x64xf32> to vector<512x64xf32>
    %28 = arith.mulf %26, %27 : vector<512x64xf32>
    %29 = vector.broadcast %10 : vector<1x64xf32> to vector<512x64xf32>
    %30 = arith.addf %28, %29 : vector<512x64xf32>
    %31 = arith.truncf %30 : vector<512x64xf32> to vector<512x64xbf16>
    %c0_14 = arith.constant 0 : index
    %c0_15 = arith.constant 0 : index
    %32 = vector.load %arg6[%c0_14, %c0_15] : memref<512x64xbf16, #tpu.memory_space<vmem>>, vector<512x64xbf16>
    tpu.vector_store %arg6[%c0_14, %c0_15], %31 {strides = array<i32>} : memref<512x64xbf16, #tpu.memory_space<vmem>>, vector<512x64xbf16>,
    return
  }
  func.func @transform_0(%arg0: i32) -> (i32, i32) {
    %c0_i32 = arith.constant 0 : i32
    %c0_i32_0 = arith.constant 0 : i32
    return %arg0, %c0_i32 : i32, i32
  }
  func.func @transform_1(%arg0: i32) -> (i32, i32) {
    %c0_i32 = arith.constant 0 : i32
    %c0_i32_0 = arith.constant 0 : i32
    %c0_i32_1 = arith.constant 0 : i32
    return %c0_i32, %c0_i32_0 : i32, i32
  }
  func.func @transform_2(%arg0: i32) -> (i32, i32) {
    %c0_i32 = arith.constant 0 : i32
    %c0_i32_0 = arith.constant 0 : i32
    %c0_i32_1 = arith.constant 0 : i32
    return %c0_i32, %c0_i32_0 : i32, i32
  }
  func.func @transform_3(%arg0: i32) -> (i32, i32) {
    %c0_i32 = arith.constant 0 : i32
    %c0_i32_0 = arith.constant 0 : i32
    %c0_i32_1 = arith.constant 0 : i32
    return %c0_i32, %c0_i32_0 : i32, i32
  }
  func.func @transform_4(%arg0: i32) -> (i32, i32) {
    %c0_i32 = arith.constant 0 : i32
    %c0_i32_0 = arith.constant 0 : i32
    %c0_i32_1 = arith.constant 0 : i32
    return %c0_i32, %c0_i32_0 : i32, i32
  }
  func.func @transform_5(%arg0: i32) -> (i32, i32) {
    %c0_i32 = arith.constant 0 : i32
    %c0_i32_0 = arith.constant 0 : i32
    return %arg0, %c0_i32 : i32, i32
  }
}

</mosaic_0001>

<llo_original>
// kernel: run_patch_embed.1
$region0: #{run_patch_embed.1}
  #allocation0 [shape = 'u32[]', space=smem, size = 0x4, offset = 0x4, fixed_abs, tag = 'smem constant byte address 0x4 - core index']
  #allocation1 [shape = 'u32[144,128]{1,0:T(1,128)}', space=vmem, size = 0x12000, scoped, tag = 'internal scratch']
  %s0 = inlined_call_operand.vmem [shape: bf16[512,147], index: 0, kind: input, shape index: {}]
  %s1 = inlined_call_operand.vmem [shape: bf16[147,64], index: 1, kind: input, shape index: {}]
  %s2 = inlined_call_operand.vmem [shape: bf16[1,64], index: 2, kind: input, shape index: {}]
  %s3 = inlined_call_operand.vmem [shape: bf16[1,64], index: 3, kind: input, shape index: {}]
  %s4 = inlined_call_operand.vmem [shape: bf16[1,64], index: 4, kind: input, shape index: {}]
  %s5 = inlined_call_operand.vmem [shape: bf16[512,64], index: 5, kind: output, shape index: {}]
  %s6 = sld [smem:[#allocation0]]
  $region30: #{run_patch_embed.1} parent=0
    _
  %s8 = ssub.s32 1, %s6
  %s9 = scalar_select 0, %s8, %s6
  // Predicated region
  $region2: #{run_patch_embed.1} parent=0 // pred_check
    _
  $region3: #{run_patch_embed.1} parent=0 // pred_check_branch
    %11 = sbr.rel (0) target = $region5
  $region4: #{run_patch_embed.1} parent=0 // pred_region
    _
  $region5: #{run_patch_embed.1} parent=0 // pred_fallthru
    _
  // Predicated region
  $region6: #{run_patch_embed.1} parent=0 // pred_check
    _
  $region7: #{run_patch_embed.1} parent=0 // pred_check_branch
    %13 = sbr.rel (0) target = $region9
  $region8: #{run_patch_embed.1} parent=0 // pred_region
    _
  $region9: #{run_patch_embed.1} parent=0 // pred_fallthru
    _
  // Predicated region
  $region10: #{run_patch_embed.1} parent=0 // pred_check
    _
  $region11: #{run_patch_embed.1} parent=0 // pred_check_branch
    %15 = sbr.rel (0) target = $region13
  $region12: #{run_patch_embed.1} parent=0 // pred_region
    _
  $region13: #{run_patch_embed.1} parent=0 // pred_fallthru
    _
  // Predicated region
  $region14: #{run_patch_embed.1} parent=0 // pred_check
    _
  $region15: #{run_patch_embed.1} parent=0 // pred_check_branch
    %17 = sbr.rel (0) target = $region17
  $region16: #{run_patch_embed.1} parent=0 // pred_region
    _
  $region17: #{run_patch_embed.1} parent=0 // pred_fallthru
    _
  // Predicated region
  $region18: #{run_patch_embed.1} parent=0 // pred_check
    _
  $region19: #{run_patch_embed.1} parent=0 // pred_check_branch
    %19 = sbr.rel (0) target = $region21
  $region20: #{run_patch_embed.1} parent=0 // pred_region
    _
  $region21: #{run_patch_embed.1} parent=0 // pred_fallthru
    _
  %v21 = vld [vmem:[%s0] sm:$0xff]
  %v22 = vld [vmem:[%s0 + $0x8] sm:$0xff]
  %v23 = vld [vmem:[%s0 + $0x10] sm:$0xff]
  %v24 = vld [vmem:[%s0 + $0x18] sm:$0xff]
  %v25 = vld [vmem:[%s0 + $0x20] sm:$0xff]
  %v26 = vld [vmem:[%s0 + $0x28] sm:$0xff]
  %v27 = vld [vmem:[%s0 + $0x30] sm:$0xff]
  %v28 = vld [vmem:[%s0 + $0x38] sm:$0xff]
  %v29 = vld [vmem:[%s0 + $0x40] sm:$0xff]
  %v30 = vld [vmem:[%s0 + $0x48] sm:$0xff]
  %v31 = vld [vmem:[%s0 + $0x50] sm:$0xff]
  %v32 = vld [vmem:[%s0 + $0x58] sm:$0xff]
  %v33 = vld [vmem:[%s0 + $0x60] sm:$0xff]
  %v34 = vld [vmem:[%s0 + $0x68] sm:$0xff]
  %v35 = vld [vmem:[%s0 + $0x70] sm:$0xff]
  %v36 = vld [vmem:[%s0 + $0x78] sm:$0xff]
  %v37 = vld [vmem:[%s0 + $0x80] sm:$0xff]
  %v38 = vld [vmem:[%s0 + $0x88] sm:$0xff]
  %v39 = vld [vmem:[%s0 + $0x90] sm:$0xff]
  %v40 = vld [vmem:[%s0 + $0x98] sm:$0xff]
  %v41 = vld [vmem:[%s0 + $0xa0] sm:$0xff]
  %v42 = vld [vmem:[%s0 + $0xa8] sm:$0xff]
  %v43 = vld [vmem:[%s0 + $0xb0] sm:$0xff]
  %v44 = vld [vmem:[%s0 + $0xb8] sm:$0xff]
  %v45 = vld [vmem:[%s0 + $0xc0] sm:$0xff]
  %v46 = vld [vmem:[%s0 + $0xc8] sm:$0xff]
  %v47 = vld [vmem:[%s0 + $0xd0] sm:$0xff]
  %v48 = vld [vmem:[%s0 + $0xd8] sm:$0xff]
  %v49 = vld [vmem:[%s0 + $0xe0] sm:$0xff]
  %v50 = vld [vmem:[%s0 + $0xe8] sm:$0xff]
  %v51 = vld [vmem:[%s0 + $0xf0] sm:$0xff]
  %v52 = vld [vmem:[%s0 + $0xf8] sm:$0xff]
  %v53 = vld [vmem:[%s0 + $0x100] sm:$0xff]
  %v54 = vld [vmem:[%s0 + $0x108] sm:$0xff]
  %v55 = vld [vmem:[%s0 + $0x110] sm:$0xff]
  %v56 = vld [vmem:[%s0 + $0x118] sm:$0xff]
  %v57 = vld [vmem:[%s0 + $0x120] sm:$0xff]
  %v58 = vld [vmem:[%s0 + $0x128] sm:$0xff]
  %v59 = vld [vmem:[%s0 + $0x130] sm:$0xff]
  %v60 = vld [vmem:[%s0 + $0x138] sm:$0xff]
  %v61 = vld [vmem:[%s0 + $0x140] sm:$0xff]
  %v62 = vld [vmem:[%s0 + $0x148] sm:$0xff]
  %v63 = vld [vmem:[%s0 + $0x150] sm:$0xff]
  %v64 = vld [vmem:[%s0 + $0x158] sm:$0xff]
  %v65 = vld [vmem:[%s0 + $0x160] sm:$0xff]
  %v66 = vld [vmem:[%s0 + $0x168] sm:$0xff]
  %v67 = vld [vmem:[%s0 + $0x170] sm:$0xff]
  %v68 = vld [vmem:[%s0 + $0x178] sm:$0xff]
  %v69 = vld [vmem:[%s0 + $0x180] sm:$0xff]
  %v70 = vld [vmem:[%s0 + $0x188] sm:$0xff]
  %v71 = vld [vmem:[%s0 + $0x190] sm:$0xff]
  %v72 = vld [vmem:[%s0 + $0x198] sm:$0xff]
  %v73 = vld [vmem:[%s0 + $0x1a0] sm:$0xff]
  %v74 = vld [vmem:[%s0 + $0x1a8] sm:$0xff]
  %v75 = vld [vmem:[%s0 + $0x1b0] sm:$0xff]
  %v76 = vld [vmem:[%s0 + $0x1b8] sm:$0xff]
  %v77 = vld [vmem:[%s0 + $0x1c0] sm:$0xff]
  %v78 = vld [vmem:[%s0 + $0x1c8] sm:$0xff]
  %v79 = vld [vmem:[%s0 + $0x1d0] sm:$0xff]
  %v80 = vld [vmem:[%s0 + $0x1d8] sm:$0xff]
  %v81 = vld [vmem:[%s0 + $0x1e0] sm:$0xff]
  %v82 = vld [vmem:[%s0 + $0x1e8] sm:$0xff]
  %v83 = vld [vmem:[%s0 + $0x1f0] sm:$0xff]
  %v84 = vld [vmem:[%s0 + $0x1f8] sm:$0xff]
  %v85 = vld [vmem:[%s1] sm:$0xf]
  %v86 = vld [vmem:[%s1 + $0x4] sm:$0xf]
  %v87 = vld [vmem:[%s1 + $0x8] sm:$0xf]
  %v88 = vld [vmem:[%s1 + $0xc] sm:$0xf]
  %v89 = vld [vmem:[%s1 + $0x10] sm:$0xf]
  %v90 = vld [vmem:[%s1 + $0x14] sm:$0xf]
  %v91 = vld [vmem:[%s1 + $0x18] sm:$0xf]
  %v92 = vld [vmem:[%s1 + $0x1c] sm:$0xf]
  %v93 = vld [vmem:[%s1 + $0x20] sm:$0xf]
  %v94 = vld [vmem:[%s1 + $0x24] sm:$0xf]
  %v95 = vld [vmem:[%s1 + $0x28] sm:$0xf]
  %v96 = vld [vmem:[%s1 + $0x2c] sm:$0xf]
  %v97 = vld [vmem:[%s1 + $0x30] sm:$0xf]
  %v98 = vld [vmem:[%s1 + $0x34] sm:$0xf]
  %v99 = vld [vmem:[%s1 + $0x38] sm:$0xf]
  %v100 = vld [vmem:[%s1 + $0x3c] sm:$0xf]
  %v101 = vld [vmem:[%s1 + $0x40] sm:$0xf]
  %v102 = vld [vmem:[%s1 + $0x44] sm:$0xf]
  %v103 = vld [vmem:[%s1 + $0x48] sm:$0x3]
  %v104 = vld [vmem:[%s2] sm:$0x1]
  %v105 = vunpack.c.l.bf16 %v104
  %v106 = vlaneseq
  %v107 = vshrl.u32 %v106, 7
  %v108 = vsub.s32 0, %v107
  %v109 = vrot.slane %v105, %v108
  %v174 = vunpack.c.l.b16 %v21
  %v175 = vunpack.c.h.b16 %v21
  %v176 = vunpack.c.l.b16 %v22
  %v177 = vunpack.c.h.b16 %v22
  %v178 = vunpack.c.l.b16 %v23
  %v179 = vunpack.c.h.b16 %v23
  %v180 = vunpack.c.l.b16 %v24
  %v181 = vunpack.c.h.b16 %v24
  %v182 = vunpack.c.l.b16 %v25
  %v183 = vunpack.c.h.b16 %v25
  %v184 = vunpack.c.l.b16 %v26
  %v185 = vunpack.c.h.b16 %v26
  %v186 = vunpack.c.l.b16 %v27
  %v187 = vunpack.c.h.b16 %v27
  %v188 = vunpack.c.l.b16 %v28
  %v189 = vunpack.c.h.b16 %v28
  %v190 = vunpack.c.l.b16 %v29
  %v191 = vunpack.c.h.b16 %v29
  %v192 = vunpack.c.l.b16 %v30
  %v193 = vunpack.c.h.b16 %v30
  %v194 = vunpack.c.l.b16 %v31
  %v195 = vunpack.c.h.b16 %v31
  %v196 = vunpack.c.l.b16 %v32
  %v197 = vunpack.c.h.b16 %v32
  %v198 = vunpack.c.l.b16 %v33
  %v199 = vunpack.c.h.b16 %v33
  %v200 = vunpack.c.l.b16 %v34
  %v201 = vunpack.c.h.b16 %v34
  %v202 = vunpack.c.l.b16 %v35
  %v203 = vunpack.c.h.b16 %v35
  %v204 = vunpack.c.l.b16 %v36
  %v205 = vunpack.c.h.b16 %v36
  %v206 = vunpack.c.l.b16 %v37
  %v207 = vunpack.c.h.b16 %v37
  %v208 = vunpack.c.l.b16 %v38
  %v209 = vunpack.c.h.b16 %v38
  %v210 = vunpack.c.l.b16 %v39
  %v211 = vunpack.c.h.b16 %v39
  %v212 = vunpack.c.l.b16 %v40
  %v213 = vunpack.c.h.b16 %v40
  %v214 = vunpack.c.l.b16 %v41
  %v215 = vunpack.c.h.b16 %v41
  %v216 = vunpack.c.l.b16 %v42
  %v217 = vunpack.c.h.b16 %v42
  %v218 = vunpack.c.l.b16 %v43
  %v219 = vunpack.c.h.b16 %v43
  %v220 = vunpack.c.l.b16 %v44
  %v221 = vunpack.c.h.b16 %v44
  %v222 = vunpack.c.l.b16 %v45
  %v223 = vunpack.c.h.b16 %v45
  %v224 = vunpack.c.l.b16 %v46
  %v225 = vunpack.c.h.b16 %v46
  %v226 = vunpack.c.l.b16 %v47
  %v227 = vunpack.c.h.b16 %v47
  %v228 = vunpack.c.l.b16 %v48
  %v229 = vunpack.c.h.b16 %v48
  %v230 = vunpack.c.l.b16 %v49
  %v231 = vunpack.c.h.b16 %v49
  %v232 = vunpack.c.l.b16 %v50
  %v233 = vunpack.c.h.b16 %v50
  %v234 = vunpack.c.l.b16 %v51
  %v235 = vunpack.c.h.b16 %v51
  %v236 = vunpack.c.l.b16 %v52
  %v237 = vunpack.c.h.b16 %v52
  %v238 = vunpack.c.l.b16 %v53
  %v239 = vunpack.c.h.b16 %v53
  %v240 = vunpack.c.l.b16 %v54
  %v241 = vunpack.c.h.b16 %v54
  %v242 = vunpack.c.l.b16 %v55
  %v243 = vunpack.c.h.b16 %v55
  %v244 = vunpack.c.l.b16 %v56
  %v245 = vunpack.c.h.b16 %v56
  %v246 = vunpack.c.l.b16 %v57
  %v247 = vunpack.c.h.b16 %v57
  %v248 = vunpack.c.l.b16 %v58
  %v249 = vunpack.c.h.b16 %v58
  %v250 = vunpack.c.l.b16 %v59
  %v251 = vunpack.c.h.b16 %v59
  %v252 = vunpack.c.l.b16 %v60
  %v253 = vunpack.c.h.b16 %v60
  %v254 = vunpack.c.l.b16 %v61
  %v255 = vunpack.c.h.b16 %v61
  %v256 = vunpack.c.l.b16 %v62
  %v257 = vunpack.c.h.b16 %v62
  %v258 = vunpack.c.l.b16 %v63
  %v259 = vunpack.c.h.b16 %v63
  %v260 = vunpack.c.l.b16 %v64
  %v261 = vunpack.c.h.b16 %v64
  %v262 = vunpack.c.l.b16 %v65
  %v263 = vunpack.c.h.b16 %v65
  %v264 = vunpack.c.l.b16 %v66
  %v265 = vunpack.c.h.b16 %v66
  %v266 = vunpack.c.l.b16 %v67
  %v267 = vunpack.c.h.b16 %v67
  %v268 = vunpack.c.l.b16 %v68
  %v269 = vunpack.c.h.b16 %v68
  %v270 = vunpack.c.l.b16 %v69
  %v271 = vunpack.c.h.b16 %v69
  %v272 = vunpack.c.l.b16 %v70
  %v273 = vunpack.c.h.b16 %v70
  %v274 = vunpack.c.l.b16 %v71
  %v275 = vunpack.c.h.b16 %v71
  %v276 = vunpack.c.l.b16 %v72
  %v277 = vunpack.c.h.b16 %v72
  %v278 = vunpack.c.l.b16 %v73
  %v279 = vunpack.c.h.b16 %v73
  %v280 = vunpack.c.l.b16 %v74
  %v281 = vunpack.c.h.b16 %v74
  %v282 = vunpack.c.l.b16 %v75
  %v283 = vunpack.c.h.b16 %v75
  %v284 = vunpack.c.l.b16 %v76
  %v285 = vunpack.c.h.b16 %v76
  %v286 = vunpack.c.l.b16 %v77
  %v287 = vunpack.c.h.b16 %v77
  %v288 = vunpack.c.l.b16 %v78
  %v289 = vunpack.c.h.b16 %v78
  %v290 = vunpack.c.l.b16 %v79
  %v291 = vunpack.c.h.b16 %v79
  %v292 = vunpack.c.l.b16 %v80
  %v293 = vunpack.c.h.b16 %v80
  %v294 = vunpack.c.l.b16 %v81
  %v295 = vunpack.c.h.b16 %v81
  %v296 = vunpack.c.l.b16 %v82
  %v297 = vunpack.c.h.b16 %v82
  %v298 = vunpack.c.l.b16 %v83
  %v299 = vunpack.c.h.b16 %v83
  %v300 = vunpack.c.l.b16 %v84
  %v301 = vunpack.c.h.b16 %v84
  %v302 = vpack.c.b16 %v176, %v174
  %v303 = vpack.c.b16 %v177, %v175
  %v304 = vpack.c.b16 %v180, %v178
  %v305 = vpack.c.b16 %v181, %v179
  %v306 = vpack.c.b16 %v184, %v182
  %v307 = vpack.c.b16 %v185, %v183
  %v308 = vpack.c.b16 %v188, %v186
  %v309 = vpack.c.b16 %v189, %v187
  %v310 = vpack.c.b16 %v192, %v190
  %v311 = vpack.c.b16 %v193, %v191
  %v312 = vpack.c.b16 %v196, %v194
  %v313 = vpack.c.b16 %v197, %v195
  %v314 = vpack.c.b16 %v200, %v198
  %v315 = vpack.c.b16 %v201, %v199
  %v316 = vpack.c.b16 %v204, %v202
  %v317 = vpack.c.b16 %v205, %v203
  %v318 = vpack.c.b16 %v208, %v206
  %v319 = vpack.c.b16 %v209, %v207
  %v320 = vpack.c.b16 %v212, %v210
  %v321 = vpack.c.b16 %v213, %v211
  %v322 = vpack.c.b16 %v216, %v214
  %v323 = vpack.c.b16 %v217, %v215
  %v324 = vpack.c.b16 %v220, %v218
  %v325 = vpack.c.b16 %v221, %v219
  %v326 = vpack.c.b16 %v224, %v222
  %v327 = vpack.c.b16 %v225, %v223
  %v328 = vpack.c.b16 %v228, %v226
  %v329 = vpack.c.b16 %v229, %v227
  %v330 = vpack.c.b16 %v232, %v230
  %v331 = vpack.c.b16 %v233, %v231
  %v332 = vpack.c.b16 %v236, %v234
  %v333 = vpack.c.b16 %v237, %v235
  %v334 = vpack.c.b16 %v240, %v238
  %v335 = vpack.c.b16 %v241, %v239
  %v336 = vpack.c.b16 %v244, %v242
  %v337 = vpack.c.b16 %v245, %v243
  %v338 = vpack.c.b16 %v248, %v246
  %v339 = vpack.c.b16 %v249, %v247
  %v340 = vpack.c.b16 %v252, %v250
  %v341 = vpack.c.b16 %v253, %v251
  %v342 = vpack.c.b16 %v256, %v254
  %v343 = vpack.c.b16 %v257, %v255
  %v344 = vpack.c.b16 %v260, %v258
  %v345 = vpack.c.b16 %v261, %v259
  %v346 = vpack.c.b16 %v264, %v262
  %v347 = vpack.c.b16 %v265, %v263
  %v348 = vpack.c.b16 %v268, %v266
  %v349 = vpack.c.b16 %v269, %v267
  %v350 = vpack.c.b16 %v272, %v270
  %v351 = vpack.c.b16 %v273, %v271
  %v352 = vpack.c.b16 %v276, %v274
  %v353 = vpack.c.b16 %v277, %v275
  %v354 = vpack.c.b16 %v280, %v278
  %v355 = vpack.c.b16 %v281, %v279
  %v356 = vpack.c.b16 %v284, %v282
  %v357 = vpack.c.b16 %v285, %v283
  %v358 = vpack.c.b16 %v288, %v286
  %v359 = vpack.c.b16 %v289, %v287
  %v360 = vpack.c.b16 %v292, %v290
  %v361 = vpack.c.b16 %v293, %v291
  %v362 = vpack.c.b16 %v296, %v294
  %v363 = vpack.c.b16 %v297, %v295
  %v364 = vpack.c.b16 %v300, %v298
  %v365 = vpack.c.b16 %v301, %v299
  %v417 = vunpack.c.l.b16 %v85
  %v418 = vunpack.c.l.b16 %v86
  %v419 = vunpack.c.l.b16 %v87
  %v420 = vunpack.c.l.b16 %v88
  %v421 = vunpack.c.l.b16 %v89
  %v422 = vunpack.c.l.b16 %v90
  %v423 = vunpack.c.l.b16 %v91
  %v424 = vunpack.c.l.b16 %v92
  %v425 = vunpack.c.l.b16 %v93
  %v426 = vunpack.c.l.b16 %v94
  %v427 = vunpack.c.l.b16 %v95
  %v428 = vunpack.c.l.b16 %v96
  %v429 = vunpack.c.l.b16 %v97
  %v430 = vunpack.c.l.b16 %v98
  %v431 = vunpack.c.l.b16 %v99
  %v432 = vunpack.c.l.b16 %v100
  %v433 = vunpack.c.l.b16 %v101
  %v434 = vunpack.c.l.b16 %v102
  %v435 = vunpack.c.l.b16 %v103
  %v436 = vpack.c.b16 %v418, %v417
  %v437 = vpack.c.b16 %v420, %v419
  %v438 = vpack.c.b16 %v422, %v421
  %v439 = vpack.c.b16 %v424, %v423
  %v440 = vpack.c.b16 %v426, %v425
  %v441 = vpack.c.b16 %v428, %v427
  %v442 = vpack.c.b16 %v430, %v429
  %v443 = vpack.c.b16 %v432, %v431
  %v444 = vpack.c.b16 %v434, %v433
  %v445 = vpack.c.b16 %v435, %v435
  %vm455 = vcmask 154624
  %v457 = vsel %vm455, %v303, 0
  %v460 = vsel %vm455, %v305, 0
  %v463 = vsel %vm455, %v307, 0
  %v466 = vsel %vm455, %v309, 0
  %v469 = vsel %vm455, %v311, 0
  %v472 = vsel %vm455, %v313, 0
  %v475 = vsel %vm455, %v315, 0
  %v478 = vsel %vm455, %v317, 0
  %v481 = vsel %vm455, %v319, 0
  %v484 = vsel %vm455, %v321, 0
  %v487 = vsel %vm455, %v323, 0
  %v490 = vsel %vm455, %v325, 0
  %v493 = vsel %vm455, %v327, 0
  %v496 = vsel %vm455, %v329, 0
  %v499 = vsel %vm455, %v331, 0
  %v502 = vsel %vm455, %v333, 0
  %v505 = vsel %vm455, %v335, 0
  %v508 = vsel %vm455, %v337, 0
  %v511 = vsel %vm455, %v339, 0
  %v514 = vsel %vm455, %v341, 0
  %v517 = vsel %vm455, %v343, 0
  %v520 = vsel %vm455, %v345, 0
  %v523 = vsel %vm455, %v347, 0
  %v526 = vsel %vm455, %v349, 0
  %v529 = vsel %vm455, %v351, 0
  %v532 = vsel %vm455, %v353, 0
  %v535 = vsel %vm455, %v355, 0
  %v538 = vsel %vm455, %v357, 0
  %v541 = vsel %vm455, %v359, 0
  %v544 = vsel %vm455, %v361, 0
  %v547 = vsel %vm455, %v363, 0
  %v550 = vsel %vm455, %v365, 0
  %vm552 = vcmask 1040384
  %vm553 = vcmask 1041408
  %v554 = vsel %vm552, 4294967295, 65535
  %v555 = vsel %vm553, %v554, 0
  %v557 = vand.u32 %v445, %v555
  %559 = vmatprep.subr.bf16.mxu0 0
  %560 = vmatpush1.bf16.msra.mxu0 %v436
  %561 = vmatprep.subr.bf16.mxu0 0
  %562 = vmatpush1.bf16.msra.mxu0 %v437
  %563 = vmatprep.subr.bf16.mxu0 0
  %564 = vmatpush1.bf16.msra.mxu0 %v438
  %565 = vmatprep.subr.bf16.mxu0 0
  %566 = vmatpush1.bf16.msra.mxu0 %v439
  %567 = vmatprep.subr.bf16.mxu0 0
  %568 = vmatpush1.bf16.msra.mxu0 %v440
  %569 = vmatprep.subr.bf16.mxu0 0
  %570 = vmatpush1.bf16.msra.mxu0 %v441
  %571 = vmatprep.subr.bf16.mxu0 0
  %572 = vmatpush1.bf16.msra.mxu0 %v442
  %573 = vmatprep.subr.bf16.mxu0 0
  %574 = vmatpush1.bf16.msra.mxu0 %v443
  %575 = vmatprep.subr.bf16.mxu0 0
  %576 = vmatpush1.bf16.msra.mxu0 %v444
  %577 = vmatprep.subr.bf16.mxu0 0
  %578 = vmatpush1.bf16.msra.mxu0 %v557
  %579 = vmatprep.subr.bf16.mxu0 0
  %580 = vmatpush1.bf16.msra.mxu0 0
  %581 = vmatprep.subr.bf16.mxu0 0
  %582 = vmatpush1.bf16.msra.mxu0 0
  %583 = vmatprep.subr.bf16.mxu0 0
  %584 = vmatpush1.bf16.msra.mxu0 0
  %585 = vmatprep.subr.bf16.mxu0 0
  %586 = vmatpush1.bf16.msra.mxu0 0
  %587 = vmatprep.subr.bf16.mxu0 0
  %588 = vmatpush1.bf16.msra.mxu0 0
  %589 = vmatprep.subr.bf16.mxu0 0
  %590 = vmatpush1.bf16.msra.mxu0 0
  %591 = vmatprep.mubr.bf16.mxu0 %v457
  %592 = vmatmul.mubr.bf16.gmra.mrb[0].mxu0 %v302
  %v593 = vpop.f32.mrb[0].mxu0
  %v594 = vadd.f32 %v109, %v593
  %v595 = vpop.f32.mrb[0].mxu0
  %v596 = vpop.f32.mrb[0].mxu0
  %v597 = vadd.f32 %v109, %v596
  %v598 = vpop.f32.mrb[0].mxu0
  %599 = vmatprep.mubr.bf16.mxu0 %v460
  %600 = vmatmul.mubr.bf16.gmra.mrb[0].mxu0 %v304
  %v601 = vpop.f32.mrb[0].mxu0
  %v602 = vadd.f32 %v109, %v601
  %v603 = vpop.f32.mrb[0].mxu0
  %v604 = vpop.f32.mrb[0].mxu0
  %v605 = vadd.f32 %v109, %v604
  %v606 = vpop.f32.mrb[0].mxu0
  %607 = vmatprep.mubr.bf16.mxu0 %v463
  %608 = vmatmul.mubr.bf16.gmra.mrb[0].mxu0 %v306
  %v609 = vpop.f32.mrb[0].mxu0
  %v610 = vadd.f32 %v109, %v609
  %v611 = vpop.f32.mrb[0].mxu0
  %v612 = vpop.f32.mrb[0].mxu0
  %v613 = vadd.f32 %v109, %v612
  %v614 = vpop.f32.mrb[0].mxu0
  %615 = vmatprep.mubr.bf16.mxu0 %v466
  %616 = vmatmul.mubr.bf16.gmra.mrb[0].mxu0 %v308
  %v617 = vpop.f32.mrb[0].mxu0
  %v618 = vadd.f32 %v109, %v617
  %v619 = vpop.f32.mrb[0].mxu0
  %v620 = vpop.f32.mrb[0].mxu0
  %v621 = vadd.f32 %v109, %v620
  %v622 = vpop.f32.mrb[0].mxu0
  %623 = vmatprep.mubr.bf16.mxu0 %v469
  %624 = vmatmul.mubr.bf16.gmra.mrb[0].mxu0 %v310
  %v625 = vpop.f32.mrb[0].mxu0
  %v626 = vadd.f32 %v109, %v625
  %v627 = vpop.f32.mrb[0].mxu0
  %v628 = vpop.f32.mrb[0].mxu0
  %v629 = vadd.f32 %v109, %v628
  %v630 = vpop.f32.mrb[0].mxu0
  %631 = vmatprep.mubr.bf16.mxu0 %v472
  %632 = vmatmul.mubr.bf16.gmra.mrb[0].mxu0 %v312
  %v633 = vpop.f32.mrb[0].mxu0
  %v634 = vadd.f32 %v109, %v633
  %v635 = vpop.f32.mrb[0].mxu0
  %v636 = vpop.f32.mrb[0].mxu0
  %v637 = vadd.f32 %v109, %v636
  %v638 = vpop.f32.mrb[0].mxu0
  %639 = vmatprep.mubr.bf16.mxu0 %v475
  %640 = vmatmul.mubr.bf16.gmra.mrb[0].mxu0 %v314
  %v641 = vpop.f32.mrb[0].mxu0
  %v642 = vadd.f32 %v109, %v641
  %v643 = vpop.f32.mrb[0].mxu0
  %v644 = vpop.f32.mrb[0].mxu0
  %v645 = vadd.f32 %v109, %v644
  %v646 = vpop.f32.mrb[0].mxu0
  %647 = vmatprep.mubr.bf16.mxu0 %v478
  %648 = vmatmul.mubr.bf16.gmra.mrb[0].mxu0 %v316
  %v649 = vpop.f32.mrb[0].mxu0
  %v650 = vadd.f32 %v109, %v649
  %v651 = vpop.f32.mrb[0].mxu0
  %v652 = vpop.f32.mrb[0].mxu0
  %v653 = vadd.f32 %v109, %v652
  %v654 = vpop.f32.mrb[0].mxu0
  %655 = vmatprep.mubr.bf16.mxu0 %v481
  %656 = vmatmul.mubr.bf16.gmra.mrb[0].mxu0 %v318
  %v657 = vpop.f32.mrb[0].mxu0
  %v658 = vadd.f32 %v109, %v657
  %v659 = vpop.f32.mrb[0].mxu0
  %v660 = vpop.f32.mrb[0].mxu0
  %v661 = vadd.f32 %v109, %v660
  %v662 = vpop.f32.mrb[0].mxu0
  %663 = vmatprep.mubr.bf16.mxu0 %v484
  %664 = vmatmul.mubr.bf16.gmra.mrb[0].mxu0 %v320
  %v665 = vpop.f32.mrb[0].mxu0
  %v666 = vadd.f32 %v109, %v665
  %v667 = vpop.f32.mrb[0].mxu0
  %v668 = vpop.f32.mrb[0].mxu0
  %v669 = vadd.f32 %v109, %v668
  %v670 = vpop.f32.mrb[0].mxu0
  %671 = vmatprep.mubr.bf16.mxu0 %v487
  %672 = vmatmul.mubr.bf16.gmra.mrb[0].mxu0 %v322
  %v673 = vpop.f32.mrb[0].mxu0
  %v674 = vadd.f32 %v109, %v673
  %v675 = vpop.f32.mrb[0].mxu0
  %v676 = vpop.f32.mrb[0].mxu0
  %v677 = vadd.f32 %v109, %v676
  %v678 = vpop.f32.mrb[0].mxu0
  %679 = vmatprep.mubr.bf16.mxu0 %v490
  %680 = vmatmul.mubr.bf16.gmra.mrb[0].mxu0 %v324
  %v681 = vpop.f32.mrb[0].mxu0
  %v682 = vadd.f32 %v109, %v681
  %v683 = vpop.f32.mrb[0].mxu0
  %v684 = vpop.f32.mrb[0].mxu0
  %v685 = vadd.f32 %v109, %v684
  %v686 = vpop.f32.mrb[0].mxu0
  %687 = vmatprep.mubr.bf16.mxu0 %v493
  %688 = vmatmul.mubr.bf16.gmra.mrb[0].mxu0 %v326
  %v689 = vpop.f32.mrb[0].mxu0
  %v690 = vadd.f32 %v109, %v689
  %v691 = vpop.f32.mrb[0].mxu0
  %v692 = vpop.f32.mrb[0].mxu0
  %v693 = vadd.f32 %v109, %v692
  %v694 = vpop.f32.mrb[0].mxu0
  %695 = vmatprep.mubr.bf16.mxu0 %v496
  %696 = vmatmul.mubr.bf16.gmra.mrb[0].mxu0 %v328
  %v697 = vpop.f32.mrb[0].mxu0
  %v698 = vadd.f32 %v109, %v697
  %v699 = vpop.f32.mrb[0].mxu0
  %v700 = vpop.f32.mrb[0].mxu0
  %v701 = vadd.f32 %v109, %v700
  %v702 = vpop.f32.mrb[0].mxu0
  %703 = vmatprep.mubr.bf16.mxu0 %v499
  %704 = vmatmul.mubr.bf16.gmra.mrb[0].mxu0 %v330
  %v705 = vpop.f32.mrb[0].mxu0
  %v706 = vadd.f32 %v109, %v705
  %v707 = vpop.f32.mrb[0].mxu0
  %v708 = vpop.f32.mrb[0].mxu0
  %v709 = vadd.f32 %v109, %v708
  %v710 = vpop.f32.mrb[0].mxu0
  %711 = vmatprep.mubr.bf16.mxu0 %v502
  %712 = vmatmul.mubr.bf16.gmra.mrb[0].mxu0 %v332
  %v713 = vpop.f32.mrb[0].mxu0
  %v714 = vadd.f32 %v109, %v713
  %v715 = vpop.f32.mrb[0].mxu0
  %v716 = vpop.f32.mrb[0].mxu0
  %v717 = vadd.f32 %v109, %v716
  %v718 = vpop.f32.mrb[0].mxu0
  %719 = vmatprep.mubr.bf16.mxu0 %v505
  %720 = vmatmul.mubr.bf16.gmra.mrb[0].mxu0 %v334
  %v721 = vpop.f32.mrb[0].mxu0
  %v722 = vadd.f32 %v109, %v721
  %v723 = vpop.f32.mrb[0].mxu0
  %v724 = vpop.f32.mrb[0].mxu0
  %v725 = vadd.f32 %v109, %v724
  %v726 = vpop.f32.mrb[0].mxu0
  %727 = vmatprep.mubr.bf16.mxu0 %v508
  %728 = vmatmul.mubr.bf16.gmra.mrb[0].mxu0 %v336
  %v729 = vpop.f32.mrb[0].mxu0
  %v730 = vadd.f32 %v109, %v729
  %v731 = vpop.f32.mrb[0].mxu0
  %v732 = vpop.f32.mrb[0].mxu0
  %v733 = vadd.f32 %v109, %v732
  %v734 = vpop.f32.mrb[0].mxu0
  %735 = vmatprep.mubr.bf16.mxu0 %v511
  %736 = vmatmul.mubr.bf16.gmra.mrb[0].mxu0 %v338
  %v737 = vpop.f32.mrb[0].mxu0
  %v738 = vadd.f32 %v109, %v737
  %v739 = vpop.f32.mrb[0].mxu0
  %v740 = vpop.f32.mrb[0].mxu0
  %v741 = vadd.f32 %v109, %v740
  %v742 = vpop.f32.mrb[0].mxu0
  %743 = vmatprep.mubr.bf16.mxu0 %v514
  %744 = vmatmul.mubr.bf16.gmra.mrb[0].mxu0 %v340
  %v745 = vpop.f32.mrb[0].mxu0
  %v746 = vadd.f32 %v109, %v745
  %v747 = vpop.f32.mrb[0].mxu0
  %v748 = vpop.f32.mrb[0].mxu0
  %v749 = vadd.f32 %v109, %v748
  %v750 = vpop.f32.mrb[0].mxu0
  %751 = vmatprep.mubr.bf16.mxu0 %v517
  %752 = vmatmul.mubr.bf16.gmra.mrb[0].mxu0 %v342
  %v753 = vpop.f32.mrb[0].mxu0
  %v754 = vadd.f32 %v109, %v753
  %v755 = vpop.f32.mrb[0].mxu0
  %v756 = vpop.f32.mrb[0].mxu0
  %v757 = vadd.f32 %v109, %v756
  %v758 = vpop.f32.mrb[0].mxu0
  %759 = vmatprep.mubr.bf16.mxu0 %v520
  %760 = vmatmul.mubr.bf16.gmra.mrb[0].mxu0 %v344
  %v761 = vpop.f32.mrb[0].mxu0
  %v762 = vadd.f32 %v109, %v761
  %v763 = vpop.f32.mrb[0].mxu0
  %v764 = vpop.f32.mrb[0].mxu0
  %v765 = vadd.f32 %v109, %v764
  %v766 = vpop.f32.mrb[0].mxu0
  %767 = vmatprep.mubr.bf16.mxu0 %v523
  %768 = vmatmul.mubr.bf16.gmra.mrb[0].mxu0 %v346
  %v769 = vpop.f32.mrb[0].mxu0
  %v770 = vadd.f32 %v109, %v769
  %v771 = vpop.f32.mrb[0].mxu0
  %v772 = vpop.f32.mrb[0].mxu0
  %v773 = vadd.f32 %v109, %v772
  %v774 = vpop.f32.mrb[0].mxu0
  %775 = vmatprep.mubr.bf16.mxu0 %v526
  %776 = vmatmul.mubr.bf16.gmra.mrb[0].mxu0 %v348
  %v777 = vpop.f32.mrb[0].mxu0
  %v778 = vadd.f32 %v109, %v777
  %v779 = vpop.f32.mrb[0].mxu0
  %v780 = vpop.f32.mrb[0].mxu0
  %v781 = vadd.f32 %v109, %v780
  %v782 = vpop.f32.mrb[0].mxu0
  %783 = vmatprep.mubr.bf16.mxu0 %v529
  %784 = vmatmul.mubr.bf16.gmra.mrb[0].mxu0 %v350
  %v785 = vpop.f32.mrb[0].mxu0
  %v786 = vadd.f32 %v109, %v785
  %v787 = vpop.f32.mrb[0].mxu0
  %v788 = vpop.f32.mrb[0].mxu0
  %v789 = vadd.f32 %v109, %v788
  %v790 = vpop.f32.mrb[0].mxu0
  %791 = vmatprep.mubr.bf16.mxu0 %v532
  %792 = vmatmul.mubr.bf16.gmra.mrb[0].mxu0 %v352
  %v793 = vpop.f32.mrb[0].mxu0
  %v794 = vadd.f32 %v109, %v793
  %v795 = vpop.f32.mrb[0].mxu0
  %v796 = vpop.f32.mrb[0].mxu0
  %v797 = vadd.f32 %v109, %v796
  %v798 = vpop.f32.mrb[0].mxu0
  %799 = vmatprep.mubr.bf16.mxu0 %v535
  %800 = vmatmul.mubr.bf16.gmra.mrb[0].mxu0 %v354
  %v801 = vpop.f32.mrb[0].mxu0
  %v802 = vadd.f32 %v109, %v801
  %v803 = vpop.f32.mrb[0].mxu0
  %v804 = vpop.f32.mrb[0].mxu0
  %v805 = vadd.f32 %v109, %v804
  %v806 = vpop.f32.mrb[0].mxu0
  %807 = vmatprep.mubr.bf16.mxu0 %v538
  %808 = vmatmul.mubr.bf16.gmra.mrb[0].mxu0 %v356
  %v809 = vpop.f32.mrb[0].mxu0
  %v810 = vadd.f32 %v109, %v809
  %v811 = vpop.f32.mrb[0].mxu0
  %v812 = vpop.f32.mrb[0].mxu0
  %v813 = vadd.f32 %v109, %v812
  %v814 = vpop.f32.mrb[0].mxu0
  %815 = vmatprep.mubr.bf16.mxu0 %v541
  %816 = vmatmul.mubr.bf16.gmra.mrb[0].mxu0 %v358
  %v817 = vpop.f32.mrb[0].mxu0
  %v818 = vadd.f32 %v109, %v817
  %v819 = vpop.f32.mrb[0].mxu0
  %v820 = vpop.f32.mrb[0].mxu0
  %v821 = vadd.f32 %v109, %v820
  %v822 = vpop.f32.mrb[0].mxu0
  %823 = vmatprep.mubr.bf16.mxu0 %v544
  %824 = vmatmul.mubr.bf16.gmra.mrb[0].mxu0 %v360
  %v825 = vpop.f32.mrb[0].mxu0
  %v826 = vadd.f32 %v109, %v825
  %v827 = vpop.f32.mrb[0].mxu0
  %v828 = vpop.f32.mrb[0].mxu0
  %v829 = vadd.f32 %v109, %v828
  %v830 = vpop.f32.mrb[0].mxu0
  %831 = vmatprep.mubr.bf16.mxu0 %v547
  %832 = vmatmul.mubr.bf16.gmra.mrb[0].mxu0 %v362
  %v833 = vpop.f32.mrb[0].mxu0
  %v834 = vadd.f32 %v109, %v833
  %v835 = vpop.f32.mrb[0].mxu0
  %v836 = vpop.f32.mrb[0].mxu0
  %v837 = vadd.f32 %v109, %v836
  %v838 = vpop.f32.mrb[0].mxu0
  %839 = vmatprep.mubr.bf16.mxu0 %v550
  %840 = vmatmul.mubr.bf16.gmra.mrb[0].mxu0 %v364
  %v841 = vpop.f32.mrb[0].mxu0
  %v842 = vadd.f32 %v109, %v841
  %v843 = vpop.f32.mrb[0].mxu0
  %v844 = vpop.f32.mrb[0].mxu0
  %v845 = vadd.f32 %v109, %v844
  %v846 = vpop.f32.mrb[0].mxu0
  %847 = vdwg.mxu0
  %v848 = vld [vmem:[%s3] sm:$0x1]
  %v849 = vunpack.c.l.bf16 %v848
  %v850 = vld [vmem:[%s4] sm:$0x1]
  %v851 = vunpack.c.l.bf16 %v850
  %vm852 = vcmask 523264
  %v853 = vsel %vm852, %v594, 0.0
  %854 = vadd.xlane.f32.xlu0 %v853
  %v855 = vpop.xlane.xlu0 %854
  %v856 = vsel %vm852, %v597, 0.0
  %857 = vadd.xlane.f32.xlu0 %v856
  %v858 = vpop.xlane.xlu0 %857
  %v859 = vsel %vm852, %v602, 0.0
  %860 = vadd.xlane.f32.xlu0 %v859
  %v861 = vpop.xlane.xlu0 %860
  %v862 = vsel %vm852, %v605, 0.0
  %863 = vadd.xlane.f32.xlu0 %v862
  %v864 = vpop.xlane.xlu0 %863
  %v865 = vsel %vm852, %v610, 0.0
  %866 = vadd.xlane.f32.xlu0 %v865
  %v867 = vpop.xlane.xlu0 %866
  %v868 = vsel %vm852, %v613, 0.0
  %869 = vadd.xlane.f32.xlu0 %v868
  %v870 = vpop.xlane.xlu0 %869
  %v871 = vsel %vm852, %v618, 0.0
  %872 = vadd.xlane.f32.xlu0 %v871
  %v873 = vpop.xlane.xlu0 %872
  %v874 = vsel %vm852, %v621, 0.0
  %875 = vadd.xlane.f32.xlu0 %v874
  %v876 = vpop.xlane.xlu0 %875
  %v877 = vsel %vm852, %v626, 0.0
  %878 = vadd.xlane.f32.xlu0 %v877
  %v879 = vpop.xlane.xlu0 %878
  %v880 = vsel %vm852, %v629, 0.0
  %881 = vadd.xlane.f32.xlu0 %v880
  %v882 = vpop.xlane.xlu0 %881
  %v883 = vsel %vm852, %v634, 0.0
  %884 = vadd.xlane.f32.xlu0 %v883
  %v885 = vpop.xlane.xlu0 %884
  %v886 = vsel %vm852, %v637, 0.0
  %887 = vadd.xlane.f32.xlu0 %v886
  %v888 = vpop.xlane.xlu0 %887
  %v889 = vsel %vm852, %v642, 0.0
  %890 = vadd.xlane.f32.xlu0 %v889
  %v891 = vpop.xlane.xlu0 %890
  %v892 = vsel %vm852, %v645, 0.0
  %893 = vadd.xlane.f32.xlu0 %v892
  %v894 = vpop.xlane.xlu0 %893
  %v895 = vsel %vm852, %v650, 0.0
  %896 = vadd.xlane.f32.xlu0 %v895
  %v897 = vpop.xlane.xlu0 %896
  %v898 = vsel %vm852, %v653, 0.0
  %899 = vadd.xlane.f32.xlu0 %v898
  %v900 = vpop.xlane.xlu0 %899
  %v901 = vsel %vm852, %v658, 0.0
  %902 = vadd.xlane.f32.xlu0 %v901
  %v903 = vpop.xlane.xlu0 %902
  %v904 = vsel %vm852, %v661, 0.0
  %905 = vadd.xlane.f32.xlu0 %v904
  %v906 = vpop.xlane.xlu0 %905
  %v907 = vsel %vm852, %v666, 0.0
  %908 = vadd.xlane.f32.xlu0 %v907
  %v909 = vpop.xlane.xlu0 %908
  %v910 = vsel %vm852, %v669, 0.0
  %911 = vadd.xlane.f32.xlu0 %v910
  %v912 = vpop.xlane.xlu0 %911
  %v913 = vsel %vm852, %v674, 0.0
  %914 = vadd.xlane.f32.xlu0 %v913
  %v915 = vpop.xlane.xlu0 %914
  %v916 = vsel %vm852, %v677, 0.0
  %917 = vadd.xlane.f32.xlu0 %v916
  %v918 = vpop.xlane.xlu0 %917
  %v919 = vsel %vm852, %v682, 0.0
  %920 = vadd.xlane.f32.xlu0 %v919
  %v921 = vpop.xlane.xlu0 %920
  %v922 = vsel %vm852, %v685, 0.0
  %923 = vadd.xlane.f32.xlu0 %v922
  %v924 = vpop.xlane.xlu0 %923
  %v925 = vsel %vm852, %v690, 0.0
  %926 = vadd.xlane.f32.xlu0 %v925
  %v927 = vpop.xlane.xlu0 %926
  %v928 = vsel %vm852, %v693, 0.0
  %929 = vadd.xlane.f32.xlu0 %v928
  %v930 = vpop.xlane.xlu0 %929
  %v931 = vsel %vm852, %v698, 0.0
  %932 = vadd.xlane.f32.xlu0 %v931
  %v933 = vpop.xlane.xlu0 %932
  %v934 = vsel %vm852, %v701, 0.0
  %935 = vadd.xlane.f32.xlu0 %v934
  %v936 = vpop.xlane.xlu0 %935
  %v937 = vsel %vm852, %v706, 0.0
  %938 = vadd.xlane.f32.xlu0 %v937
  %v939 = vpop.xlane.xlu0 %938
  %v940 = vsel %vm852, %v709, 0.0
  %941 = vadd.xlane.f32.xlu0 %v940
  %v942 = vpop.xlane.xlu0 %941
  %v943 = vsel %vm852, %v714, 0.0
  %944 = vadd.xlane.f32.xlu0 %v943
  %v945 = vpop.xlane.xlu0 %944
  %v946 = vsel %vm852, %v717, 0.0
  %947 = vadd.xlane.f32.xlu0 %v946
  %v948 = vpop.xlane.xlu0 %947
  %v949 = vsel %vm852, %v722, 0.0
  %950 = vadd.xlane.f32.xlu0 %v949
  %v951 = vpop.xlane.xlu0 %950
  %v952 = vsel %vm852, %v725, 0.0
  %953 = vadd.xlane.f32.xlu0 %v952
  %v954 = vpop.xlane.xlu0 %953
  %v955 = vsel %vm852, %v730, 0.0
  %956 = vadd.xlane.f32.xlu0 %v955
  %v957 = vpop.xlane.xlu0 %956
  %v958 = vsel %vm852, %v733, 0.0
  %959 = vadd.xlane.f32.xlu0 %v958
  %v960 = vpop.xlane.xlu0 %959
  %v961 = vsel %vm852, %v738, 0.0
  %962 = vadd.xlane.f32.xlu0 %v961
  %v963 = vpop.xlane.xlu0 %962
  %v964 = vsel %vm852, %v741, 0.0
  %965 = vadd.xlane.f32.xlu0 %v964
  %v966 = vpop.xlane.xlu0 %965
  %v967 = vsel %vm852, %v746, 0.0
  %968 = vadd.xlane.f32.xlu0 %v967
  %v969 = vpop.xlane.xlu0 %968
  %v970 = vsel %vm852, %v749, 0.0
  %971 = vadd.xlane.f32.xlu0 %v970
  %v972 = vpop.xlane.xlu0 %971
  %v973 = vsel %vm852, %v754, 0.0
  %974 = vadd.xlane.f32.xlu0 %v973
  %v975 = vpop.xlane.xlu0 %974
  %v976 = vsel %vm852, %v757, 0.0
  %977 = vadd.xlane.f32.xlu0 %v976
  %v978 = vpop.xlane.xlu0 %977
  %v979 = vsel %vm852, %v762, 0.0
  %980 = vadd.xlane.f32.xlu0 %v979
  %v981 = vpop.xlane.xlu0 %980
  %v982 = vsel %vm852, %v765, 0.0
  %983 = vadd.xlane.f32.xlu0 %v982
  %v984 = vpop.xlane.xlu0 %983
  %v985 = vsel %vm852, %v770, 0.0
  %986 = vadd.xlane.f32.xlu0 %v985
  %v987 = vpop.xlane.xlu0 %986
  %v988 = vsel %vm852, %v773, 0.0
  %989 = vadd.xlane.f32.xlu0 %v988
  %v990 = vpop.xlane.xlu0 %989
  %v991 = vsel %vm852, %v778, 0.0
  %992 = vadd.xlane.f32.xlu0 %v991
  %v993 = vpop.xlane.xlu0 %992
  %v994 = vsel %vm852, %v781, 0.0
  %995 = vadd.xlane.f32.xlu0 %v994
  %v996 = vpop.xlane.xlu0 %995
  %v997 = vsel %vm852, %v786, 0.0
  %998 = vadd.xlane.f32.xlu0 %v997
  %v999 = vpop.xlane.xlu0 %998
  %v1000 = vsel %vm852, %v789, 0.0
  %1001 = vadd.xlane.f32.xlu0 %v1000
  %v1002 = vpop.xlane.xlu0 %1001
  %v1003 = vsel %vm852, %v794, 0.0
  %1004 = vadd.xlane.f32.xlu0 %v1003
  %v1005 = vpop.xlane.xlu0 %1004
  %v1006 = vsel %vm852, %v797, 0.0
  %1007 = vadd.xlane.f32.xlu0 %v1006
  %v1008 = vpop.xlane.xlu0 %1007
  %v1009 = vsel %vm852, %v802, 0.0
  %1010 = vadd.xlane.f32.xlu0 %v1009
  %v1011 = vpop.xlane.xlu0 %1010
  %v1012 = vsel %vm852, %v805, 0.0
  %1013 = vadd.xlane.f32.xlu0 %v1012
  %v1014 = vpop.xlane.xlu0 %1013
  %v1015 = vsel %vm852, %v810, 0.0
  %1016 = vadd.xlane.f32.xlu0 %v1015
  %v1017 = vpop.xlane.xlu0 %1016
  %v1018 = vsel %vm852, %v813, 0.0
  %1019 = vadd.xlane.f32.xlu0 %v1018
  %v1020 = vpop.xlane.xlu0 %1019
  %v1021 = vsel %vm852, %v818, 0.0
  %1022 = vadd.xlane.f32.xlu0 %v1021
  %v1023 = vpop.xlane.xlu0 %1022
  %v1024 = vsel %vm852, %v821, 0.0
  %1025 = vadd.xlane.f32.xlu0 %v1024
  %v1026 = vpop.xlane.xlu0 %1025
  %v1027 = vsel %vm852, %v826, 0.0
  %1028 = vadd.xlane.f32.xlu0 %v1027
  %v1029 = vpop.xlane.xlu0 %1028
  %v1030 = vsel %vm852, %v829, 0.0
  %1031 = vadd.xlane.f32.xlu0 %v1030
  %v1032 = vpop.xlane.xlu0 %1031
  %v1033 = vsel %vm852, %v834, 0.0
  %1034 = vadd.xlane.f32.xlu0 %v1033
  %v1035 = vpop.xlane.xlu0 %1034
  %v1036 = vsel %vm852, %v837, 0.0
  %1037 = vadd.xlane.f32.xlu0 %v1036
  %v1038 = vpop.xlane.xlu0 %1037
  %v1039 = vsel %vm852, %v842, 0.0
  %1040 = vadd.xlane.f32.xlu0 %v1039
  %v1041 = vpop.xlane.xlu0 %1040
  %v1042 = vsel %vm852, %v845, 0.0
  %1043 = vadd.xlane.f32.xlu0 %v1042
  %v1044 = vpop.xlane.xlu0 %1043
  %v1045 = vrcp.pop 64.0
  %v1046 = vmul.f32 %v855, %v1045
  %v1047 = vmul.f32 %v858, %v1045
  %v1048 = vmul.f32 %v861, %v1045
  %v1049 = vmul.f32 %v864, %v1045
  %v1050 = vmul.f32 %v867, %v1045
  %v1051 = vmul.f32 %v870, %v1045
  %v1052 = vmul.f32 %v873, %v1045
  %v1053 = vmul.f32 %v876, %v1045
  %v1054 = vmul.f32 %v879, %v1045
  %v1055 = vmul.f32 %v882, %v1045
  %v1056 = vmul.f32 %v885, %v1045
  %v1057 = vmul.f32 %v888, %v1045
  %v1058 = vmul.f32 %v891, %v1045
  %v1059 = vmul.f32 %v894, %v1045
  %v1060 = vmul.f32 %v897, %v1045
  %v1061 = vmul.f32 %v900, %v1045
  %v1062 = vmul.f32 %v903, %v1045
  %v1063 = vmul.f32 %v906, %v1045
  %v1064 = vmul.f32 %v909, %v1045
  %v1065 = vmul.f32 %v912, %v1045
  %v1066 = vmul.f32 %v915, %v1045
  %v1067 = vmul.f32 %v918, %v1045
  %v1068 = vmul.f32 %v921, %v1045
  %v1069 = vmul.f32 %v924, %v1045
  %v1070 = vmul.f32 %v927, %v1045
  %v1071 = vmul.f32 %v930, %v1045
  %v1072 = vmul.f32 %v933, %v1045
  %v1073 = vmul.f32 %v936, %v1045
  %v1074 = vmul.f32 %v939, %v1045
  %v1075 = vmul.f32 %v942, %v1045
  %v1076 = vmul.f32 %v945, %v1045
  %v1077 = vmul.f32 %v948, %v1045
  %v1078 = vmul.f32 %v951, %v1045
  %v1079 = vmul.f32 %v954, %v1045
  %v1080 = vmul.f32 %v957, %v1045
  %v1081 = vmul.f32 %v960, %v1045
  %v1082 = vmul.f32 %v963, %v1045
  %v1083 = vmul.f32 %v966, %v1045
  %v1084 = vmul.f32 %v969, %v1045
  %v1085 = vmul.f32 %v972, %v1045
  %v1086 = vmul.f32 %v975, %v1045
  %v1087 = vmul.f32 %v978, %v1045
  %v1088 = vmul.f32 %v981, %v1045
  %v1089 = vmul.f32 %v984, %v1045
  %v1090 = vmul.f32 %v987, %v1045
  %v1091 = vmul.f32 %v990, %v1045
  %v1092 = vmul.f32 %v993, %v1045
  %v1093 = vmul.f32 %v996, %v1045
  %v1094 = vmul.f32 %v999, %v1045
  %v1095 = vmul.f32 %v1002, %v1045
  %v1096 = vmul.f32 %v1005, %v1045
  %v1097 = vmul.f32 %v1008, %v1045
  %v1098 = vmul.f32 %v1011, %v1045
  %v1099 = vmul.f32 %v1014, %v1045
  %v1100 = vmul.f32 %v1017, %v1045
  %v1101 = vmul.f32 %v1020, %v1045
  %v1102 = vmul.f32 %v1023, %v1045
  %v1103 = vmul.f32 %v1026, %v1045
  %v1104 = vmul.f32 %v1029, %v1045
  %v1105 = vmul.f32 %v1032, %v1045
  %v1106 = vmul.f32 %v1035, %v1045
  %v1107 = vmul.f32 %v1038, %v1045
  %v1108 = vmul.f32 %v1041, %v1045
  %v1109 = vmul.f32 %v1044, %v1045
  %v1110 = vsub.f32 %v594, %v1046
  %v1111 = vsub.f32 %v597, %v1047
  %v1112 = vsub.f32 %v602, %v1048
  %v1113 = vsub.f32 %v605, %v1049
  %v1114 = vsub.f32 %v610, %v1050
  %v1115 = vsub.f32 %v613, %v1051
  %v1116 = vsub.f32 %v618, %v1052
  %v1117 = vsub.f32 %v621, %v1053
  %v1118 = vsub.f32 %v626, %v1054
  %v1119 = vsub.f32 %v629, %v1055
  %v1120 = vsub.f32 %v634, %v1056
  %v1121 = vsub.f32 %v637, %v1057
  %v1122 = vsub.f32 %v642, %v1058
  %v1123 = vsub.f32 %v645, %v1059
  %v1124 = vsub.f32 %v650, %v1060
  %v1125 = vsub.f32 %v653, %v1061
  %v1126 = vsub.f32 %v658, %v1062
  %v1127 = vsub.f32 %v661, %v1063
  %v1128 = vsub.f32 %v666, %v1064
  %v1129 = vsub.f32 %v669, %v1065
  %v1130 = vsub.f32 %v674, %v1066
  %v1131 = vsub.f32 %v677, %v1067
  %v1132 = vsub.f32 %v682, %v1068
  %v1133 = vsub.f32 %v685, %v1069
  %v1134 = vsub.f32 %v690, %v1070
  %v1135 = vsub.f32 %v693, %v1071
  %v1136 = vsub.f32 %v698, %v1072
  %v1137 = vsub.f32 %v701, %v1073
  %v1138 = vsub.f32 %v706, %v1074
  %v1139 = vsub.f32 %v709, %v1075
  %v1140 = vsub.f32 %v714, %v1076
  %v1141 = vsub.f32 %v717, %v1077
  %v1142 = vsub.f32 %v722, %v1078
  %v1143 = vsub.f32 %v725, %v1079
  %v1144 = vsub.f32 %v730, %v1080
  %v1145 = vsub.f32 %v733, %v1081
  %v1146 = vsub.f32 %v738, %v1082
  %v1147 = vsub.f32 %v741, %v1083
  %v1148 = vsub.f32 %v746, %v1084
  %v1149 = vsub.f32 %v749, %v1085
  %v1150 = vsub.f32 %v754, %v1086
  %v1151 = vsub.f32 %v757, %v1087
  %v1152 = vsub.f32 %v762, %v1088
  %v1153 = vsub.f32 %v765, %v1089
  %v1154 = vsub.f32 %v770, %v1090
  %v1155 = vsub.f32 %v773, %v1091
  %v1156 = vsub.f32 %v778, %v1092
  %v1157 = vsub.f32 %v781, %v1093
  %v1158 = vsub.f32 %v786, %v1094
  %v1159 = vsub.f32 %v789, %v1095
  %v1160 = vsub.f32 %v794, %v1096
  %v1161 = vsub.f32 %v797, %v1097
  %v1162 = vsub.f32 %v802, %v1098
  %v1163 = vsub.f32 %v805, %v1099
  %v1164 = vsub.f32 %v810, %v1100
  %v1165 = vsub.f32 %v813, %v1101
  %v1166 = vsub.f32 %v818, %v1102
  %v1167 = vsub.f32 %v821, %v1103
  %v1168 = vsub.f32 %v826, %v1104
  %v1169 = vsub.f32 %v829, %v1105
  %v1170 = vsub.f32 %v834, %v1106
  %v1171 = vsub.f32 %v837, %v1107
  %v1172 = vsub.f32 %v842, %v1108
  %v1173 = vsub.f32 %v845, %v1109
  %v1174 = vmul.f32 %v1110, %v1110
  %v1175 = vmul.f32 %v1111, %v1111
  %v1176 = vmul.f32 %v1112, %v1112
  %v1177 = vmul.f32 %v1113, %v1113
  %v1178 = vmul.f32 %v1114, %v1114
  %v1179 = vmul.f32 %v1115, %v1115
  %v1180 = vmul.f32 %v1116, %v1116
  %v1181 = vmul.f32 %v1117, %v1117
  %v1182 = vmul.f32 %v1118, %v1118
  %v1183 = vmul.f32 %v1119, %v1119
  %v1184 = vmul.f32 %v1120, %v1120
  %v1185 = vmul.f32 %v1121, %v1121
  %v1186 = vmul.f32 %v1122, %v1122
  %v1187 = vmul.f32 %v1123, %v1123
  %v1188 = vmul.f32 %v1124, %v1124
  %v1189 = vmul.f32 %v1125, %v1125
  %v1190 = vmul.f32 %v1126, %v1126
  %v1191 = vmul.f32 %v1127, %v1127
  %v1192 = vmul.f32 %v1128, %v1128
  %v1193 = vmul.f32 %v1129, %v1129
  %v1194 = vmul.f32 %v1130, %v1130
  %v1195 = vmul.f32 %v1131, %v1131
  %v1196 = vmul.f32 %v1132, %v1132
  %v1197 = vmul.f32 %v1133, %v1133
  %v1198 = vmul.f32 %v1134, %v1134
  %v1199 = vmul.f32 %v1135, %v1135
  %v1200 = vmul.f32 %v1136, %v1136
  %v1201 = vmul.f32 %v1137, %v1137
  %v1202 = vmul.f32 %v1138, %v1138
  %v1203 = vmul.f32 %v1139, %v1139
  %v1204 = vmul.f32 %v1140, %v1140
  %v1205 = vmul.f32 %v1141, %v1141
  %v1206 = vmul.f32 %v1142, %v1142
  %v1207 = vmul.f32 %v1143, %v1143
  %v1208 = vmul.f32 %v1144, %v1144
  %v1209 = vmul.f32 %v1145, %v1145
  %v1210 = vmul.f32 %v1146, %v1146
  %v1211 = vmul.f32 %v1147, %v1147
  %v1212 = vmul.f32 %v1148, %v1148
  %v1213 = vmul.f32 %v1149, %v1149
  %v1214 = vmul.f32 %v1150, %v1150
  %v1215 = vmul.f32 %v1151, %v1151
  %v1216 = vmul.f32 %v1152, %v1152
  %v1217 = vmul.f32 %v1153, %v1153
  %v1218 = vmul.f32 %v1154, %v1154
  %v1219 = vmul.f32 %v1155, %v1155
  %v1220 = vmul.f32 %v1156, %v1156
  %v1221 = vmul.f32 %v1157, %v1157
  %v1222 = vmul.f32 %v1158, %v1158
  %v1223 = vmul.f32 %v1159, %v1159
  %v1224 = vmul.f32 %v1160, %v1160
  %v1225 = vmul.f32 %v1161, %v1161
  %v1226 = vmul.f32 %v1162, %v1162
  %v1227 = vmul.f32 %v1163, %v1163
  %v1228 = vmul.f32 %v1164, %v1164
  %v1229 = vmul.f32 %v1165, %v1165
  %v1230 = vmul.f32 %v1166, %v1166
  %v1231 = vmul.f32 %v1167, %v1167
  %v1232 = vmul.f32 %v1168, %v1168
  %v1233 = vmul.f32 %v1169, %v1169
  %v1234 = vmul.f32 %v1170, %v1170
  %v1235 = vmul.f32 %v1171, %v1171
  %v1236 = vmul.f32 %v1172, %v1172
  %v1237 = vmul.f32 %v1173, %v1173
  %v1238 = vsel %vm852, %v1174, 0.0
  %1239 = vadd.xlane.f32.xlu0 %v1238
  %v1240 = vpop.xlane.xlu0 %1239
  %v1241 = vsel %vm852, %v1175, 0.0
  %1242 = vadd.xlane.f32.xlu0 %v1241
  %v1243 = vpop.xlane.xlu0 %1242
  %v1244 = vsel %vm852, %v1176, 0.0
  %1245 = vadd.xlane.f32.xlu0 %v1244
  %v1246 = vpop.xlane.xlu0 %1245
  %v1247 = vsel %vm852, %v1177, 0.0
  %1248 = vadd.xlane.f32.xlu0 %v1247
  %v1249 = vpop.xlane.xlu0 %1248
  %v1250 = vsel %vm852, %v1178, 0.0
  %1251 = vadd.xlane.f32.xlu0 %v1250
  %v1252 = vpop.xlane.xlu0 %1251
  %v1253 = vsel %vm852, %v1179, 0.0
  %1254 = vadd.xlane.f32.xlu0 %v1253
  %v1255 = vpop.xlane.xlu0 %1254
  %v1256 = vsel %vm852, %v1180, 0.0
  %1257 = vadd.xlane.f32.xlu0 %v1256
  %v1258 = vpop.xlane.xlu0 %1257
  %v1259 = vsel %vm852, %v1181, 0.0
  %1260 = vadd.xlane.f32.xlu0 %v1259
  %v1261 = vpop.xlane.xlu0 %1260
  %v1262 = vsel %vm852, %v1182, 0.0
  %1263 = vadd.xlane.f32.xlu0 %v1262
  %v1264 = vpop.xlane.xlu0 %1263
  %v1265 = vsel %vm852, %v1183, 0.0
  %1266 = vadd.xlane.f32.xlu0 %v1265
  %v1267 = vpop.xlane.xlu0 %1266
  %v1268 = vsel %vm852, %v1184, 0.0
  %1269 = vadd.xlane.f32.xlu0 %v1268
  %v1270 = vpop.xlane.xlu0 %1269
  %v1271 = vsel %vm852, %v1185, 0.0
  %1272 = vadd.xlane.f32.xlu0 %v1271
  %v1273 = vpop.xlane.xlu0 %1272
  %v1274 = vsel %vm852, %v1186, 0.0
  %1275 = vadd.xlane.f32.xlu0 %v1274
  %v1276 = vpop.xlane.xlu0 %1275
  %v1277 = vsel %vm852, %v1187, 0.0
  %1278 = vadd.xlane.f32.xlu0 %v1277
  %v1279 = vpop.xlane.xlu0 %1278
  %v1280 = vsel %vm852, %v1188, 0.0
  %1281 = vadd.xlane.f32.xlu0 %v1280
  %v1282 = vpop.xlane.xlu0 %1281
  %v1283 = vsel %vm852, %v1189, 0.0
  %1284 = vadd.xlane.f32.xlu0 %v1283
  %v1285 = vpop.xlane.xlu0 %1284
  %v1286 = vsel %vm852, %v1190, 0.0
  %1287 = vadd.xlane.f32.xlu0 %v1286
  %v1288 = vpop.xlane.xlu0 %1287
  %v1289 = vsel %vm852, %v1191, 0.0
  %1290 = vadd.xlane.f32.xlu0 %v1289
  %v1291 = vpop.xlane.xlu0 %1290
  %v1292 = vsel %vm852, %v1192, 0.0
  %1293 = vadd.xlane.f32.xlu0 %v1292
  %v1294 = vpop.xlane.xlu0 %1293
  %v1295 = vsel %vm852, %v1193, 0.0
  %1296 = vadd.xlane.f32.xlu0 %v1295
  %v1297 = vpop.xlane.xlu0 %1296
  %v1298 = vsel %vm852, %v1194, 0.0
  %1299 = vadd.xlane.f32.xlu0 %v1298
  %v1300 = vpop.xlane.xlu0 %1299
  %v1301 = vsel %vm852, %v1195, 0.0
  %1302 = vadd.xlane.f32.xlu0 %v1301
  %v1303 = vpop.xlane.xlu0 %1302
  %v1304 = vsel %vm852, %v1196, 0.0
  %1305 = vadd.xlane.f32.xlu0 %v1304
  %v1306 = vpop.xlane.xlu0 %1305
  %v1307 = vsel %vm852, %v1197, 0.0
  %1308 = vadd.xlane.f32.xlu0 %v1307
  %v1309 = vpop.xlane.xlu0 %1308
  %v1310 = vsel %vm852, %v1198, 0.0
  %1311 = vadd.xlane.f32.xlu0 %v1310
  %v1312 = vpop.xlane.xlu0 %1311
  %v1313 = vsel %vm852, %v1199, 0.0
  %1314 = vadd.xlane.f32.xlu0 %v1313
  %v1315 = vpop.xlane.xlu0 %1314
  %v1316 = vsel %vm852, %v1200, 0.0
  %1317 = vadd.xlane.f32.xlu0 %v1316
  %v1318 = vpop.xlane.xlu0 %1317
  %v1319 = vsel %vm852, %v1201, 0.0
  %1320 = vadd.xlane.f32.xlu0 %v1319
  %v1321 = vpop.xlane.xlu0 %1320
  %v1322 = vsel %vm852, %v1202, 0.0
  %1323 = vadd.xlane.f32.xlu0 %v1322
  %v1324 = vpop.xlane.xlu0 %1323
  %v1325 = vsel %vm852, %v1203, 0.0
  %1326 = vadd.xlane.f32.xlu0 %v1325
  %v1327 = vpop.xlane.xlu0 %1326
  %v1328 = vsel %vm852, %v1204, 0.0
  %1329 = vadd.xlane.f32.xlu0 %v1328
  %v1330 = vpop.xlane.xlu0 %1329
  %v1331 = vsel %vm852, %v1205, 0.0
  %1332 = vadd.xlane.f32.xlu0 %v1331
  %v1333 = vpop.xlane.xlu0 %1332
  %v1334 = vsel %vm852, %v1206, 0.0
  %1335 = vadd.xlane.f32.xlu0 %v1334
  %v1336 = vpop.xlane.xlu0 %1335
  %v1337 = vsel %vm852, %v1207, 0.0
  %1338 = vadd.xlane.f32.xlu0 %v1337
  %v1339 = vpop.xlane.xlu0 %1338
  %v1340 = vsel %vm852, %v1208, 0.0
  %1341 = vadd.xlane.f32.xlu0 %v1340
  %v1342 = vpop.xlane.xlu0 %1341
  %v1343 = vsel %vm852, %v1209, 0.0
  %1344 = vadd.xlane.f32.xlu0 %v1343
  %v1345 = vpop.xlane.xlu0 %1344
  %v1346 = vsel %vm852, %v1210, 0.0
  %1347 = vadd.xlane.f32.xlu0 %v1346
  %v1348 = vpop.xlane.xlu0 %1347
  %v1349 = vsel %vm852, %v1211, 0.0
  %1350 = vadd.xlane.f32.xlu0 %v1349
  %v1351 = vpop.xlane.xlu0 %1350
  %v1352 = vsel %vm852, %v1212, 0.0
  %1353 = vadd.xlane.f32.xlu0 %v1352
  %v1354 = vpop.xlane.xlu0 %1353
  %v1355 = vsel %vm852, %v1213, 0.0
  %1356 = vadd.xlane.f32.xlu0 %v1355
  %v1357 = vpop.xlane.xlu0 %1356
  %v1358 = vsel %vm852, %v1214, 0.0
  %1359 = vadd.xlane.f32.xlu0 %v1358
  %v1360 = vpop.xlane.xlu0 %1359
  %v1361 = vsel %vm852, %v1215, 0.0
  %1362 = vadd.xlane.f32.xlu0 %v1361
  %v1363 = vpop.xlane.xlu0 %1362
  %v1364 = vsel %vm852, %v1216, 0.0
  %1365 = vadd.xlane.f32.xlu0 %v1364
  %v1366 = vpop.xlane.xlu0 %1365
  %v1367 = vsel %vm852, %v1217, 0.0
  %1368 = vadd.xlane.f32.xlu0 %v1367
  %v1369 = vpop.xlane.xlu0 %1368
  %v1370 = vsel %vm852, %v1218, 0.0
  %1371 = vadd.xlane.f32.xlu0 %v1370
  %v1372 = vpop.xlane.xlu0 %1371
  %v1373 = vsel %vm852, %v1219, 0.0
  %1374 = vadd.xlane.f32.xlu0 %v1373
  %v1375 = vpop.xlane.xlu0 %1374
  %v1376 = vsel %vm852, %v1220, 0.0
  %1377 = vadd.xlane.f32.xlu0 %v1376
  %v1378 = vpop.xlane.xlu0 %1377
  %v1379 = vsel %vm852, %v1221, 0.0
  %1380 = vadd.xlane.f32.xlu0 %v1379
  %v1381 = vpop.xlane.xlu0 %1380
  %v1382 = vsel %vm852, %v1222, 0.0
  %1383 = vadd.xlane.f32.xlu0 %v1382
  %v1384 = vpop.xlane.xlu0 %1383
  %v1385 = vsel %vm852, %v1223, 0.0
  %1386 = vadd.xlane.f32.xlu0 %v1385
  %v1387 = vpop.xlane.xlu0 %1386
  %v1388 = vsel %vm852, %v1224, 0.0
  %1389 = vadd.xlane.f32.xlu0 %v1388
  %v1390 = vpop.xlane.xlu0 %1389
  %v1391 = vsel %vm852, %v1225, 0.0
  %1392 = vadd.xlane.f32.xlu0 %v1391
  %v1393 = vpop.xlane.xlu0 %1392
  %v1394 = vsel %vm852, %v1226, 0.0
  %1395 = vadd.xlane.f32.xlu0 %v1394
  %v1396 = vpop.xlane.xlu0 %1395
  %v1397 = vsel %vm852, %v1227, 0.0
  %1398 = vadd.xlane.f32.xlu0 %v1397
  %v1399 = vpop.xlane.xlu0 %1398
  %v1400 = vsel %vm852, %v1228, 0.0
  %1401 = vadd.xlane.f32.xlu0 %v1400
  %v1402 = vpop.xlane.xlu0 %1401
  %v1403 = vsel %vm852, %v1229, 0.0
  %1404 = vadd.xlane.f32.xlu0 %v1403
  %v1405 = vpop.xlane.xlu0 %1404
  %v1406 = vsel %vm852, %v1230, 0.0
  %1407 = vadd.xlane.f32.xlu0 %v1406
  %v1408 = vpop.xlane.xlu0 %1407
  %v1409 = vsel %vm852, %v1231, 0.0
  %1410 = vadd.xlane.f32.xlu0 %v1409
  %v1411 = vpop.xlane.xlu0 %1410
  %v1412 = vsel %vm852, %v1232, 0.0
  %1413 = vadd.xlane.f32.xlu0 %v1412
  %v1414 = vpop.xlane.xlu0 %1413
  %v1415 = vsel %vm852, %v1233, 0.0
  %1416 = vadd.xlane.f32.xlu0 %v1415
  %v1417 = vpop.xlane.xlu0 %1416
  %v1418 = vsel %vm852, %v1234, 0.0
  %1419 = vadd.xlane.f32.xlu0 %v1418
  %v1420 = vpop.xlane.xlu0 %1419
  %v1421 = vsel %vm852, %v1235, 0.0
  %1422 = vadd.xlane.f32.xlu0 %v1421
  %v1423 = vpop.xlane.xlu0 %1422
  %v1424 = vsel %vm852, %v1236, 0.0
  %1425 = vadd.xlane.f32.xlu0 %v1424
  %v1426 = vpop.xlane.xlu0 %1425
  %v1427 = vsel %vm852, %v1237, 0.0
  %1428 = vadd.xlane.f32.xlu0 %v1427
  %v1429 = vpop.xlane.xlu0 %1428
  %v1430 = vmul.f32 %v1240, %v1045
  %v1431 = vmul.f32 %v1243, %v1045
  %v1432 = vmul.f32 %v1246, %v1045
  %v1433 = vmul.f32 %v1249, %v1045
  %v1434 = vmul.f32 %v1252, %v1045
  %v1435 = vmul.f32 %v1255, %v1045
  %v1436 = vmul.f32 %v1258, %v1045
  %v1437 = vmul.f32 %v1261, %v1045
  %v1438 = vmul.f32 %v1264, %v1045
  %v1439 = vmul.f32 %v1267, %v1045
  %v1440 = vmul.f32 %v1270, %v1045
  %v1441 = vmul.f32 %v1273, %v1045
  %v1442 = vmul.f32 %v1276, %v1045
  %v1443 = vmul.f32 %v1279, %v1045
  %v1444 = vmul.f32 %v1282, %v1045
  %v1445 = vmul.f32 %v1285, %v1045
  %v1446 = vmul.f32 %v1288, %v1045
  %v1447 = vmul.f32 %v1291, %v1045
  %v1448 = vmul.f32 %v1294, %v1045
  %v1449 = vmul.f32 %v1297, %v1045
  %v1450 = vmul.f32 %v1300, %v1045
  %v1451 = vmul.f32 %v1303, %v1045
  %v1452 = vmul.f32 %v1306, %v1045
  %v1453 = vmul.f32 %v1309, %v1045
  %v1454 = vmul.f32 %v1312, %v1045
  %v1455 = vmul.f32 %v1315, %v1045
  %v1456 = vmul.f32 %v1318, %v1045
  %v1457 = vmul.f32 %v1321, %v1045
  %v1458 = vmul.f32 %v1324, %v1045
  %v1459 = vmul.f32 %v1327, %v1045
  %v1460 = vmul.f32 %v1330, %v1045
  %v1461 = vmul.f32 %v1333, %v1045
  %v1462 = vmul.f32 %v1336, %v1045
  %v1463 = vmul.f32 %v1339, %v1045
  %v1464 = vmul.f32 %v1342, %v1045
  %v1465 = vmul.f32 %v1345, %v1045
  %v1466 = vmul.f32 %v1348, %v1045
  %v1467 = vmul.f32 %v1351, %v1045
  %v1468 = vmul.f32 %v1354, %v1045
  %v1469 = vmul.f32 %v1357, %v1045
  %v1470 = vmul.f32 %v1360, %v1045
  %v1471 = vmul.f32 %v1363, %v1045
  %v1472 = vmul.f32 %v1366, %v1045
  %v1473 = vmul.f32 %v1369, %v1045
  %v1474 = vmul.f32 %v1372, %v1045
  %v1475 = vmul.f32 %v1375, %v1045
  %v1476 = vmul.f32 %v1378, %v1045
  %v1477 = vmul.f32 %v1381, %v1045
  %v1478 = vmul.f32 %v1384, %v1045
  %v1479 = vmul.f32 %v1387, %v1045
  %v1480 = vmul.f32 %v1390, %v1045
  %v1481 = vmul.f32 %v1393, %v1045
  %v1482 = vmul.f32 %v1396, %v1045
  %v1483 = vmul.f32 %v1399, %v1045
  %v1484 = vmul.f32 %v1402, %v1045
  %v1485 = vmul.f32 %v1405, %v1045
  %v1486 = vmul.f32 %v1408, %v1045
  %v1487 = vmul.f32 %v1411, %v1045
  %v1488 = vmul.f32 %v1414, %v1045
  %v1489 = vmul.f32 %v1417, %v1045
  %v1490 = vmul.f32 %v1420, %v1045
  %v1491 = vmul.f32 %v1423, %v1045
  %v1492 = vmul.f32 %v1426, %v1045
  %v1493 = vmul.f32 %v1429, %v1045
  %v1494 = vadd.f32 %v1430, 1e-05
  %v1495 = vadd.f32 %v1431, 1e-05
  %v1496 = vadd.f32 %v1432, 1e-05
  %v1497 = vadd.f32 %v1433, 1e-05
  %v1498 = vadd.f32 %v1434, 1e-05
  %v1499 = vadd.f32 %v1435, 1e-05
  %v1500 = vadd.f32 %v1436, 1e-05
  %v1501 = vadd.f32 %v1437, 1e-05
  %v1502 = vadd.f32 %v1438, 1e-05
  %v1503 = vadd.f32 %v1439, 1e-05
  %v1504 = vadd.f32 %v1440, 1e-05
  %v1505 = vadd.f32 %v1441, 1e-05
  %v1506 = vadd.f32 %v1442, 1e-05
  %v1507 = vadd.f32 %v1443, 1e-05
  %v1508 = vadd.f32 %v1444, 1e-05
  %v1509 = vadd.f32 %v1445, 1e-05
  %v1510 = vadd.f32 %v1446, 1e-05
  %v1511 = vadd.f32 %v1447, 1e-05
  %v1512 = vadd.f32 %v1448, 1e-05
  %v1513 = vadd.f32 %v1449, 1e-05
  %v1514 = vadd.f32 %v1450, 1e-05
  %v1515 = vadd.f32 %v1451, 1e-05
  %v1516 = vadd.f32 %v1452, 1e-05
  %v1517 = vadd.f32 %v1453, 1e-05
  %v1518 = vadd.f32 %v1454, 1e-05
  %v1519 = vadd.f32 %v1455, 1e-05
  %v1520 = vadd.f32 %v1456, 1e-05
  %v1521 = vadd.f32 %v1457, 1e-05
  %v1522 = vadd.f32 %v1458, 1e-05
  %v1523 = vadd.f32 %v1459, 1e-05
  %v1524 = vadd.f32 %v1460, 1e-05
  %v1525 = vadd.f32 %v1461, 1e-05
  %v1526 = vadd.f32 %v1462, 1e-05
  %v1527 = vadd.f32 %v1463, 1e-05
  %v1528 = vadd.f32 %v1464, 1e-05
  %v1529 = vadd.f32 %v1465, 1e-05
  %v1530 = vadd.f32 %v1466, 1e-05
  %v1531 = vadd.f32 %v1467, 1e-05
  %v1532 = vadd.f32 %v1468, 1e-05
  %v1533 = vadd.f32 %v1469, 1e-05
  %v1534 = vadd.f32 %v1470, 1e-05
  %v1535 = vadd.f32 %v1471, 1e-05
  %v1536 = vadd.f32 %v1472, 1e-05
  %v1537 = vadd.f32 %v1473, 1e-05
  %v1538 = vadd.f32 %v1474, 1e-05
  %v1539 = vadd.f32 %v1475, 1e-05
  %v1540 = vadd.f32 %v1476, 1e-05
  %v1541 = vadd.f32 %v1477, 1e-05
  %v1542 = vadd.f32 %v1478, 1e-05
  %v1543 = vadd.f32 %v1479, 1e-05
  %v1544 = vadd.f32 %v1480, 1e-05
  %v1545 = vadd.f32 %v1481, 1e-05
  %v1546 = vadd.f32 %v1482, 1e-05
  %v1547 = vadd.f32 %v1483, 1e-05
  %v1548 = vadd.f32 %v1484, 1e-05
  %v1549 = vadd.f32 %v1485, 1e-05
  %v1550 = vadd.f32 %v1486, 1e-05
  %v1551 = vadd.f32 %v1487, 1e-05
  %v1552 = vadd.f32 %v1488, 1e-05
  %v1553 = vadd.f32 %v1489, 1e-05
  %v1554 = vadd.f32 %v1490, 1e-05
  %v1555 = vadd.f32 %v1491, 1e-05
  %v1556 = vadd.f32 %v1492, 1e-05
  %v1557 = vadd.f32 %v1493, 1e-05
  %v1558 = vrsqrt.pop %v1494
  %v1559 = vrsqrt.pop %v1495
  %v1560 = vrsqrt.pop %v1496
  %v1561 = vrsqrt.pop %v1497
  %v1562 = vrsqrt.pop %v1498
  %v1563 = vrsqrt.pop %v1499
  %v1564 = vrsqrt.pop %v1500
  %v1565 = vrsqrt.pop %v1501
  %v1566 = vrsqrt.pop %v1502
  %v1567 = vrsqrt.pop %v1503
  %v1568 = vrsqrt.pop %v1504
  %v1569 = vrsqrt.pop %v1505
  %v1570 = vrsqrt.pop %v1506
  %v1571 = vrsqrt.pop %v1507
  %v1572 = vrsqrt.pop %v1508
  %v1573 = vrsqrt.pop %v1509
  %v1574 = vrsqrt.pop %v1510
  %v1575 = vrsqrt.pop %v1511
  %v1576 = vrsqrt.pop %v1512
  %v1577 = vrsqrt.pop %v1513
  %v1578 = vrsqrt.pop %v1514
  %v1579 = vrsqrt.pop %v1515
  %v1580 = vrsqrt.pop %v1516
  %v1581 = vrsqrt.pop %v1517
  %v1582 = vrsqrt.pop %v1518
  %v1583 = vrsqrt.pop %v1519
  %v1584 = vrsqrt.pop %v1520
  %v1585 = vrsqrt.pop %v1521
  %v1586 = vrsqrt.pop %v1522
  %v1587 = vrsqrt.pop %v1523
  %v1588 = vrsqrt.pop %v1524
  %v1589 = vrsqrt.pop %v1525
  %v1590 = vrsqrt.pop %v1526
  %v1591 = vrsqrt.pop %v1527
  %v1592 = vrsqrt.pop %v1528
  %v1593 = vrsqrt.pop %v1529
  %v1594 = vrsqrt.pop %v1530
  %v1595 = vrsqrt.pop %v1531
  %v1596 = vrsqrt.pop %v1532
  %v1597 = vrsqrt.pop %v1533
  %v1598 = vrsqrt.pop %v1534
  %v1599 = vrsqrt.pop %v1535
  %v1600 = vrsqrt.pop %v1536
  %v1601 = vrsqrt.pop %v1537
  %v1602 = vrsqrt.pop %v1538
  %v1603 = vrsqrt.pop %v1539
  %v1604 = vrsqrt.pop %v1540
  %v1605 = vrsqrt.pop %v1541
  %v1606 = vrsqrt.pop %v1542
  %v1607 = vrsqrt.pop %v1543
  %v1608 = vrsqrt.pop %v1544
  %v1609 = vrsqrt.pop %v1545
  %v1610 = vrsqrt.pop %v1546
  %v1611 = vrsqrt.pop %v1547
  %v1612 = vrsqrt.pop %v1548
  %v1613 = vrsqrt.pop %v1549
  %v1614 = vrsqrt.pop %v1550
  %v1615 = vrsqrt.pop %v1551
  %v1616 = vrsqrt.pop %v1552
  %v1617 = vrsqrt.pop %v1553
  %v1618 = vrsqrt.pop %v1554
  %v1619 = vrsqrt.pop %v1555
  %v1620 = vrsqrt.pop %v1556
  %v1621 = vrsqrt.pop %v1557
  %v1622 = vmul.f32 %v1110, %v1558
  %v1623 = vmul.f32 %v1111, %v1559
  %v1624 = vmul.f32 %v1112, %v1560
  %v1625 = vmul.f32 %v1113, %v1561
  %v1626 = vmul.f32 %v1114, %v1562
  %v1627 = vmul.f32 %v1115, %v1563
  %v1628 = vmul.f32 %v1116, %v1564
  %v1629 = vmul.f32 %v1117, %v1565
  %v1630 = vmul.f32 %v1118, %v1566
  %v1631 = vmul.f32 %v1119, %v1567
  %v1632 = vmul.f32 %v1120, %v1568
  %v1633 = vmul.f32 %v1121, %v1569
  %v1634 = vmul.f32 %v1122, %v1570
  %v1635 = vmul.f32 %v1123, %v1571
  %v1636 = vmul.f32 %v1124, %v1572
  %v1637 = vmul.f32 %v1125, %v1573
  %v1638 = vmul.f32 %v1126, %v1574
  %v1639 = vmul.f32 %v1127, %v1575
  %v1640 = vmul.f32 %v1128, %v1576
  %v1641 = vmul.f32 %v1129, %v1577
  %v1642 = vmul.f32 %v1130, %v1578
  %v1643 = vmul.f32 %v1131, %v1579
  %v1644 = vmul.f32 %v1132, %v1580
  %v1645 = vmul.f32 %v1133, %v1581
  %v1646 = vmul.f32 %v1134, %v1582
  %v1647 = vmul.f32 %v1135, %v1583
  %v1648 = vmul.f32 %v1136, %v1584
  %v1649 = vmul.f32 %v1137, %v1585
  %v1650 = vmul.f32 %v1138, %v1586
  %v1651 = vmul.f32 %v1139, %v1587
  %v1652 = vmul.f32 %v1140, %v1588
  %v1653 = vmul.f32 %v1141, %v1589
  %v1654 = vmul.f32 %v1142, %v1590
  %v1655 = vmul.f32 %v1143, %v1591
  %v1656 = vmul.f32 %v1144, %v1592
  %v1657 = vmul.f32 %v1145, %v1593
  %v1658 = vmul.f32 %v1146, %v1594
  %v1659 = vmul.f32 %v1147, %v1595
  %v1660 = vmul.f32 %v1148, %v1596
  %v1661 = vmul.f32 %v1149, %v1597
  %v1662 = vmul.f32 %v1150, %v1598
  %v1663 = vmul.f32 %v1151, %v1599
  %v1664 = vmul.f32 %v1152, %v1600
  %v1665 = vmul.f32 %v1153, %v1601
  %v1666 = vmul.f32 %v1154, %v1602
  %v1667 = vmul.f32 %v1155, %v1603
  %v1668 = vmul.f32 %v1156, %v1604
  %v1669 = vmul.f32 %v1157, %v1605
  %v1670 = vmul.f32 %v1158, %v1606
  %v1671 = vmul.f32 %v1159, %v1607
  %v1672 = vmul.f32 %v1160, %v1608
  %v1673 = vmul.f32 %v1161, %v1609
  %v1674 = vmul.f32 %v1162, %v1610
  %v1675 = vmul.f32 %v1163, %v1611
  %v1676 = vmul.f32 %v1164, %v1612
  %v1677 = vmul.f32 %v1165, %v1613
  %v1678 = vmul.f32 %v1166, %v1614
  %v1679 = vmul.f32 %v1167, %v1615
  %v1680 = vmul.f32 %v1168, %v1616
  %v1681 = vmul.f32 %v1169, %v1617
  %v1682 = vmul.f32 %v1170, %v1618
  %v1683 = vmul.f32 %v1171, %v1619
  %v1684 = vmul.f32 %v1172, %v1620
  %v1685 = vmul.f32 %v1173, %v1621
  %v1686 = vlaneseq
  %v1687 = vshrl.u32 %v1686, 7
  %v1688 = vsub.s32 0, %v1687
  %v1689 = vrot.slane %v849, %v1688
  %v1690 = vmul.f32 %v1622, %v1689
  %v1691 = vmul.f32 %v1623, %v1689
  %v1692 = vmul.f32 %v1624, %v1689
  %v1693 = vmul.f32 %v1625, %v1689
  %v1694 = vmul.f32 %v1626, %v1689
  %v1695 = vmul.f32 %v1627, %v1689
  %v1696 = vmul.f32 %v1628, %v1689
  %v1697 = vmul.f32 %v1629, %v1689
  %v1698 = vmul.f32 %v1630, %v1689
  %v1699 = vmul.f32 %v1631, %v1689
  %v1700 = vmul.f32 %v1632, %v1689
  %v1701 = vmul.f32 %v1633, %v1689
  %v1702 = vmul.f32 %v1634, %v1689
  %v1703 = vmul.f32 %v1635, %v1689
  %v1704 = vmul.f32 %v1636, %v1689
  %v1705 = vmul.f32 %v1637, %v1689
  %v1706 = vmul.f32 %v1638, %v1689
  %v1707 = vmul.f32 %v1639, %v1689
  %v1708 = vmul.f32 %v1640, %v1689
  %v1709 = vmul.f32 %v1641, %v1689
  %v1710 = vmul.f32 %v1642, %v1689
  %v1711 = vmul.f32 %v1643, %v1689
  %v1712 = vmul.f32 %v1644, %v1689
  %v1713 = vmul.f32 %v1645, %v1689
  %v1714 = vmul.f32 %v1646, %v1689
  %v1715 = vmul.f32 %v1647, %v1689
  %v1716 = vmul.f32 %v1648, %v1689
  %v1717 = vmul.f32 %v1649, %v1689
  %v1718 = vmul.f32 %v1650, %v1689
  %v1719 = vmul.f32 %v1651, %v1689
  %v1720 = vmul.f32 %v1652, %v1689
  %v1721 = vmul.f32 %v1653, %v1689
  %v1722 = vmul.f32 %v1654, %v1689
  %v1723 = vmul.f32 %v1655, %v1689
  %v1724 = vmul.f32 %v1656, %v1689
  %v1725 = vmul.f32 %v1657, %v1689
  %v1726 = vmul.f32 %v1658, %v1689
  %v1727 = vmul.f32 %v1659, %v1689
  %v1728 = vmul.f32 %v1660, %v1689
  %v1729 = vmul.f32 %v1661, %v1689
  %v1730 = vmul.f32 %v1662, %v1689
  %v1731 = vmul.f32 %v1663, %v1689
  %v1732 = vmul.f32 %v1664, %v1689
  %v1733 = vmul.f32 %v1665, %v1689
  %v1734 = vmul.f32 %v1666, %v1689
  %v1735 = vmul.f32 %v1667, %v1689
  %v1736 = vmul.f32 %v1668, %v1689
  %v1737 = vmul.f32 %v1669, %v1689
  %v1738 = vmul.f32 %v1670, %v1689
  %v1739 = vmul.f32 %v1671, %v1689
  %v1740 = vmul.f32 %v1672, %v1689
  %v1741 = vmul.f32 %v1673, %v1689
  %v1742 = vmul.f32 %v1674, %v1689
  %v1743 = vmul.f32 %v1675, %v1689
  %v1744 = vmul.f32 %v1676, %v1689
  %v1745 = vmul.f32 %v1677, %v1689
  %v1746 = vmul.f32 %v1678, %v1689
  %v1747 = vmul.f32 %v1679, %v1689
  %v1748 = vmul.f32 %v1680, %v1689
  %v1749 = vmul.f32 %v1681, %v1689
  %v1750 = vmul.f32 %v1682, %v1689
  %v1751 = vmul.f32 %v1683, %v1689
  %v1752 = vmul.f32 %v1684, %v1689
  %v1753 = vmul.f32 %v1685, %v1689
  %v1754 = vlaneseq
  %v1755 = vshrl.u32 %v1754, 7
  %v1756 = vsub.s32 0, %v1755
  %v1757 = vrot.slane %v851, %v1756
  %v1758 = vadd.f32 %v1690, %v1757
  %v1759 = vadd.f32 %v1691, %v1757
  %v1760 = vadd.f32 %v1692, %v1757
  %v1761 = vadd.f32 %v1693, %v1757
  %v1762 = vadd.f32 %v1694, %v1757
  %v1763 = vadd.f32 %v1695, %v1757
  %v1764 = vadd.f32 %v1696, %v1757
  %v1765 = vadd.f32 %v1697, %v1757
  %v1766 = vadd.f32 %v1698, %v1757
  %v1767 = vadd.f32 %v1699, %v1757
  %v1768 = vadd.f32 %v1700, %v1757
  %v1769 = vadd.f32 %v1701, %v1757
  %v1770 = vadd.f32 %v1702, %v1757
  %v1771 = vadd.f32 %v1703, %v1757
  %v1772 = vadd.f32 %v1704, %v1757
  %v1773 = vadd.f32 %v1705, %v1757
  %v1774 = vadd.f32 %v1706, %v1757
  %v1775 = vadd.f32 %v1707, %v1757
  %v1776 = vadd.f32 %v1708, %v1757
  %v1777 = vadd.f32 %v1709, %v1757
  %v1778 = vadd.f32 %v1710, %v1757
  %v1779 = vadd.f32 %v1711, %v1757
  %v1780 = vadd.f32 %v1712, %v1757
  %v1781 = vadd.f32 %v1713, %v1757
  %v1782 = vadd.f32 %v1714, %v1757
  %v1783 = vadd.f32 %v1715, %v1757
  %v1784 = vadd.f32 %v1716, %v1757
  %v1785 = vadd.f32 %v1717, %v1757
  %v1786 = vadd.f32 %v1718, %v1757
  %v1787 = vadd.f32 %v1719, %v1757
  %v1788 = vadd.f32 %v1720, %v1757
  %v1789 = vadd.f32 %v1721, %v1757
  %v1790 = vadd.f32 %v1722, %v1757
  %v1791 = vadd.f32 %v1723, %v1757
  %v1792 = vadd.f32 %v1724, %v1757
  %v1793 = vadd.f32 %v1725, %v1757
  %v1794 = vadd.f32 %v1726, %v1757
  %v1795 = vadd.f32 %v1727, %v1757
  %v1796 = vadd.f32 %v1728, %v1757
  %v1797 = vadd.f32 %v1729, %v1757
  %v1798 = vadd.f32 %v1730, %v1757
  %v1799 = vadd.f32 %v1731, %v1757
  %v1800 = vadd.f32 %v1732, %v1757
  %v1801 = vadd.f32 %v1733, %v1757
  %v1802 = vadd.f32 %v1734, %v1757
  %v1803 = vadd.f32 %v1735, %v1757
  %v1804 = vadd.f32 %v1736, %v1757
  %v1805 = vadd.f32 %v1737, %v1757
  %v1806 = vadd.f32 %v1738, %v1757
  %v1807 = vadd.f32 %v1739, %v1757
  %v1808 = vadd.f32 %v1740, %v1757
  %v1809 = vadd.f32 %v1741, %v1757
  %v1810 = vadd.f32 %v1742, %v1757
  %v1811 = vadd.f32 %v1743, %v1757
  %v1812 = vadd.f32 %v1744, %v1757
  %v1813 = vadd.f32 %v1745, %v1757
  %v1814 = vadd.f32 %v1746, %v1757
  %v1815 = vadd.f32 %v1747, %v1757
  %v1816 = vadd.f32 %v1748, %v1757
  %v1817 = vadd.f32 %v1749, %v1757
  %v1818 = vadd.f32 %v1750, %v1757
  %v1819 = vadd.f32 %v1751, %v1757
  %v1820 = vadd.f32 %v1752, %v1757
  %v1821 = vadd.f32 %v1753, %v1757
  %v1822 = vpack.c.bf16 %v1759, %v1758
  %v1823 = vpack.c.bf16 %v1761, %v1760
  %v1824 = vpack.c.bf16 %v1763, %v1762
  %v1825 = vpack.c.bf16 %v1765, %v1764
  %v1826 = vpack.c.bf16 %v1767, %v1766
  %v1827 = vpack.c.bf16 %v1769, %v1768
  %v1828 = vpack.c.bf16 %v1771, %v1770
  %v1829 = vpack.c.bf16 %v1773, %v1772
  %v1830 = vpack.c.bf16 %v1775, %v1774
  %v1831 = vpack.c.bf16 %v1777, %v1776
  %v1832 = vpack.c.bf16 %v1779, %v1778
  %v1833 = vpack.c.bf16 %v1781, %v1780
  %v1834 = vpack.c.bf16 %v1783, %v1782
  %v1835 = vpack.c.bf16 %v1785, %v1784
  %v1836 = vpack.c.bf16 %v1787, %v1786
  %v1837 = vpack.c.bf16 %v1789, %v1788
  %v1838 = vpack.c.bf16 %v1791, %v1790
  %v1839 = vpack.c.bf16 %v1793, %v1792
  %v1840 = vpack.c.bf16 %v1795, %v1794
  %v1841 = vpack.c.bf16 %v1797, %v1796
  %v1842 = vpack.c.bf16 %v1799, %v1798
  %v1843 = vpack.c.bf16 %v1801, %v1800
  %v1844 = vpack.c.bf16 %v1803, %v1802
  %v1845 = vpack.c.bf16 %v1805, %v1804
  %v1846 = vpack.c.bf16 %v1807, %v1806
  %v1847 = vpack.c.bf16 %v1809, %v1808
  %v1848 = vpack.c.bf16 %v1811, %v1810
  %v1849 = vpack.c.bf16 %v1813, %v1812
  %v1850 = vpack.c.bf16 %v1815, %v1814
  %v1851 = vpack.c.bf16 %v1817, %v1816
  %v1852 = vpack.c.bf16 %v1819, %v1818
  %v1853 = vpack.c.bf16 %v1821, %v1820
  %v1886 = vunpack.c.l.b16 %v1822
  %v1887 = vunpack.c.h.b16 %v1822
  %v1888 = vunpack.c.l.b16 %v1823
  %v1889 = vunpack.c.h.b16 %v1823
  %v1890 = vunpack.c.l.b16 %v1824
  %v1891 = vunpack.c.h.b16 %v1824
  %v1892 = vunpack.c.l.b16 %v1825
  %v1893 = vunpack.c.h.b16 %v1825
  %v1894 = vunpack.c.l.b16 %v1826
  %v1895 = vunpack.c.h.b16 %v1826
  %v1896 = vunpack.c.l.b16 %v1827
  %v1897 = vunpack.c.h.b16 %v1827
  %v1898 = vunpack.c.l.b16 %v1828
  %v1899 = vunpack.c.h.b16 %v1828
  %v1900 = vunpack.c.l.b16 %v1829
  %v1901 = vunpack.c.h.b16 %v1829
  %v1902 = vunpack.c.l.b16 %v1830
  %v1903 = vunpack.c.h.b16 %v1830
  %v1904 = vunpack.c.l.b16 %v1831
  %v1905 = vunpack.c.h.b16 %v1831
  %v1906 = vunpack.c.l.b16 %v1832
  %v1907 = vunpack.c.h.b16 %v1832
  %v1908 = vunpack.c.l.b16 %v1833
  %v1909 = vunpack.c.h.b16 %v1833
  %v1910 = vunpack.c.l.b16 %v1834
  %v1911 = vunpack.c.h.b16 %v1834
  %v1912 = vunpack.c.l.b16 %v1835
  %v1913 = vunpack.c.h.b16 %v1835
  %v1914 = vunpack.c.l.b16 %v1836
  %v1915 = vunpack.c.h.b16 %v1836
  %v1916 = vunpack.c.l.b16 %v1837
  %v1917 = vunpack.c.h.b16 %v1837
  %v1918 = vunpack.c.l.b16 %v1838
  %v1919 = vunpack.c.h.b16 %v1838
  %v1920 = vunpack.c.l.b16 %v1839
  %v1921 = vunpack.c.h.b16 %v1839
  %v1922 = vunpack.c.l.b16 %v1840
  %v1923 = vunpack.c.h.b16 %v1840
  %v1924 = vunpack.c.l.b16 %v1841
  %v1925 = vunpack.c.h.b16 %v1841
  %v1926 = vunpack.c.l.b16 %v1842
  %v1927 = vunpack.c.h.b16 %v1842
  %v1928 = vunpack.c.l.b16 %v1843
  %v1929 = vunpack.c.h.b16 %v1843
  %v1930 = vunpack.c.l.b16 %v1844
  %v1931 = vunpack.c.h.b16 %v1844
  %v1932 = vunpack.c.l.b16 %v1845
  %v1933 = vunpack.c.h.b16 %v1845
  %v1934 = vunpack.c.l.b16 %v1846
  %v1935 = vunpack.c.h.b16 %v1846
  %v1936 = vunpack.c.l.b16 %v1847
  %v1937 = vunpack.c.h.b16 %v1847
  %v1938 = vunpack.c.l.b16 %v1848
  %v1939 = vunpack.c.h.b16 %v1848
  %v1940 = vunpack.c.l.b16 %v1849
  %v1941 = vunpack.c.h.b16 %v1849
  %v1942 = vunpack.c.l.b16 %v1850
  %v1943 = vunpack.c.h.b16 %v1850
  %v1944 = vunpack.c.l.b16 %v1851
  %v1945 = vunpack.c.h.b16 %v1851
  %v1946 = vunpack.c.l.b16 %v1852
  %v1947 = vunpack.c.h.b16 %v1852
  %v1948 = vunpack.c.l.b16 %v1853
  %v1949 = vunpack.c.h.b16 %v1853
  %v1950 = vpack.c.b16 %v1886, %v1886
  %v1951 = vpack.c.b16 %v1887, %v1887
  %v1952 = vpack.c.b16 %v1888, %v1888
  %v1953 = vpack.c.b16 %v1889, %v1889
  %v1954 = vpack.c.b16 %v1890, %v1890
  %v1955 = vpack.c.b16 %v1891, %v1891
  %v1956 = vpack.c.b16 %v1892, %v1892
  %v1957 = vpack.c.b16 %v1893, %v1893
  %v1958 = vpack.c.b16 %v1894, %v1894
  %v1959 = vpack.c.b16 %v1895, %v1895
  %v1960 = vpack.c.b16 %v1896, %v1896
  %v1961 = vpack.c.b16 %v1897, %v1897
  %v1962 = vpack.c.b16 %v1898, %v1898
  %v1963 = vpack.c.b16 %v1899, %v1899
  %v1964 = vpack.c.b16 %v1900, %v1900
  %v1965 = vpack.c.b16 %v1901, %v1901
  %v1966 = vpack.c.b16 %v1902, %v1902
  %v1967 = vpack.c.b16 %v1903, %v1903
  %v1968 = vpack.c.b16 %v1904, %v1904
  %v1969 = vpack.c.b16 %v1905, %v1905
  %v1970 = vpack.c.b16 %v1906, %v1906
  %v1971 = vpack.c.b16 %v1907, %v1907
  %v1972 = vpack.c.b16 %v1908, %v1908
  %v1973 = vpack.c.b16 %v1909, %v1909
  %v1974 = vpack.c.b16 %v1910, %v1910
  %v1975 = vpack.c.b16 %v1911, %v1911
  %v1976 = vpack.c.b16 %v1912, %v1912
  %v1977 = vpack.c.b16 %v1913, %v1913
  %v1978 = vpack.c.b16 %v1914, %v1914
  %v1979 = vpack.c.b16 %v1915, %v1915
  %v1980 = vpack.c.b16 %v1916, %v1916
  %v1981 = vpack.c.b16 %v1917, %v1917
  %v1982 = vpack.c.b16 %v1918, %v1918
  %v1983 = vpack.c.b16 %v1919, %v1919
  %v1984 = vpack.c.b16 %v1920, %v1920
  %v1985 = vpack.c.b16 %v1921, %v1921
  %v1986 = vpack.c.b16 %v1922, %v1922
  %v1987 = vpack.c.b16 %v1923, %v1923
  %v1988 = vpack.c.b16 %v1924, %v1924
  %v1989 = vpack.c.b16 %v1925, %v1925
  %v1990 = vpack.c.b16 %v1926, %v1926
  %v1991 = vpack.c.b16 %v1927, %v1927
  %v1992 = vpack.c.b16 %v1928, %v1928
  %v1993 = vpack.c.b16 %v1929, %v1929
  %v1994 = vpack.c.b16 %v1930, %v1930
  %v1995 = vpack.c.b16 %v1931, %v1931
  %v1996 = vpack.c.b16 %v1932, %v1932
  %v1997 = vpack.c.b16 %v1933, %v1933
  %v1998 = vpack.c.b16 %v1934, %v1934
  %v1999 = vpack.c.b16 %v1935, %v1935
  %v2000 = vpack.c.b16 %v1936, %v1936
  %v2001 = vpack.c.b16 %v1937, %v1937
  %v2002 = vpack.c.b16 %v1938, %v1938
  %v2003 = vpack.c.b16 %v1939, %v1939
  %v2004 = vpack.c.b16 %v1940, %v1940
  %v2005 = vpack.c.b16 %v1941, %v1941
  %v2006 = vpack.c.b16 %v1942, %v1942
  %v2007 = vpack.c.b16 %v1943, %v1943
  %v2008 = vpack.c.b16 %v1944, %v1944
  %v2009 = vpack.c.b16 %v1945, %v1945
  %v2010 = vpack.c.b16 %v1946, %v1946
  %v2011 = vpack.c.b16 %v1947, %v1947
  %v2012 = vpack.c.b16 %v1948, %v1948
  %v2013 = vpack.c.b16 %v1949, %v1949
  %vm2078 = vcmask 519168
  %2079 = vst.msk [vmem:[%s5] sm:$0xf] %vm2078, %v1950
  %2080 = vst.msk [vmem:[%s5 + $0x4] sm:$0xf] %vm2078, %v1951
  %2081 = vst.msk [vmem:[%s5 + $0x8] sm:$0xf] %vm2078, %v1952
  %2082 = vst.msk [vmem:[%s5 + $0xc] sm:$0xf] %vm2078, %v1953
  %2083 = vst.msk [vmem:[%s5 + $0x10] sm:$0xf] %vm2078, %v1954
  %2084 = vst.msk [vmem:[%s5 + $0x14] sm:$0xf] %vm2078, %v1955
  %2085 = vst.msk [vmem:[%s5 + $0x18] sm:$0xf] %vm2078, %v1956
  %2086 = vst.msk [vmem:[%s5 + $0x1c] sm:$0xf] %vm2078, %v1957
  %2087 = vst.msk [vmem:[%s5 + $0x20] sm:$0xf] %vm2078, %v1958
  %2088 = vst.msk [vmem:[%s5 + $0x24] sm:$0xf] %vm2078, %v1959
  %2089 = vst.msk [vmem:[%s5 + $0x28] sm:$0xf] %vm2078, %v1960
  %2090 = vst.msk [vmem:[%s5 + $0x2c] sm:$0xf] %vm2078, %v1961
  %2091 = vst.msk [vmem:[%s5 + $0x30] sm:$0xf] %vm2078, %v1962
  %2092 = vst.msk [vmem:[%s5 + $0x34] sm:$0xf] %vm2078, %v1963
  %2093 = vst.msk [vmem:[%s5 + $0x38] sm:$0xf] %vm2078, %v1964
  %2094 = vst.msk [vmem:[%s5 + $0x3c] sm:$0xf] %vm2078, %v1965
  %2095 = vst.msk [vmem:[%s5 + $0x40] sm:$0xf] %vm2078, %v1966
  %2096 = vst.msk [vmem:[%s5 + $0x44] sm:$0xf] %vm2078, %v1967
  %2097 = vst.msk [vmem:[%s5 + $0x48] sm:$0xf] %vm2078, %v1968
  %2098 = vst.msk [vmem:[%s5 + $0x4c] sm:$0xf] %vm2078, %v1969
  %2099 = vst.msk [vmem:[%s5 + $0x50] sm:$0xf] %vm2078, %v1970
  %2100 = vst.msk [vmem:[%s5 + $0x54] sm:$0xf] %vm2078, %v1971
  %2101 = vst.msk [vmem:[%s5 + $0x58] sm:$0xf] %vm2078, %v1972
  %2102 = vst.msk [vmem:[%s5 + $0x5c] sm:$0xf] %vm2078, %v1973
  %2103 = vst.msk [vmem:[%s5 + $0x60] sm:$0xf] %vm2078, %v1974
  %2104 = vst.msk [vmem:[%s5 + $0x64] sm:$0xf] %vm2078, %v1975
  %2105 = vst.msk [vmem:[%s5 + $0x68] sm:$0xf] %vm2078, %v1976
  %2106 = vst.msk [vmem:[%s5 + $0x6c] sm:$0xf] %vm2078, %v1977
  %2107 = vst.msk [vmem:[%s5 + $0x70] sm:$0xf] %vm2078, %v1978
  %2108 = vst.msk [vmem:[%s5 + $0x74] sm:$0xf] %vm2078, %v1979
  %2109 = vst.msk [vmem:[%s5 + $0x78] sm:$0xf] %vm2078, %v1980
  %2110 = vst.msk [vmem:[%s5 + $0x7c] sm:$0xf] %vm2078, %v1981
  %2111 = vst.msk [vmem:[%s5 + $0x80] sm:$0xf] %vm2078, %v1982
  %2112 = vst.msk [vmem:[%s5 + $0x84] sm:$0xf] %vm2078, %v1983
  %2113 = vst.msk [vmem:[%s5 + $0x88] sm:$0xf] %vm2078, %v1984
  %2114 = vst.msk [vmem:[%s5 + $0x8c] sm:$0xf] %vm2078, %v1985
  %2115 = vst.msk [vmem:[%s5 + $0x90] sm:$0xf] %vm2078, %v1986
  %2116 = vst.msk [vmem:[%s5 + $0x94] sm:$0xf] %vm2078, %v1987
  %2117 = vst.msk [vmem:[%s5 + $0x98] sm:$0xf] %vm2078, %v1988
  %2118 = vst.msk [vmem:[%s5 + $0x9c] sm:$0xf] %vm2078, %v1989
  %2119 = vst.msk [vmem:[%s5 + $0xa0] sm:$0xf] %vm2078, %v1990
  %2120 = vst.msk [vmem:[%s5 + $0xa4] sm:$0xf] %vm2078, %v1991
  %2121 = vst.msk [vmem:[%s5 + $0xa8] sm:$0xf] %vm2078, %v1992
  %2122 = vst.msk [vmem:[%s5 + $0xac] sm:$0xf] %vm2078, %v1993
  %2123 = vst.msk [vmem:[%s5 + $0xb0] sm:$0xf] %vm2078, %v1994
  %2124 = vst.msk [vmem:[%s5 + $0xb4] sm:$0xf] %vm2078, %v1995
  %2125 = vst.msk [vmem:[%s5 + $0xb8] sm:$0xf] %vm2078, %v1996
  %2126 = vst.msk [vmem:[%s5 + $0xbc] sm:$0xf] %vm2078, %v1997
  %2127 = vst.msk [vmem:[%s5 + $0xc0] sm:$0xf] %vm2078, %v1998
  %2128 = vst.msk [vmem:[%s5 + $0xc4] sm:$0xf] %vm2078, %v1999
  %2129 = vst.msk [vmem:[%s5 + $0xc8] sm:$0xf] %vm2078, %v2000
  %2130 = vst.msk [vmem:[%s5 + $0xcc] sm:$0xf] %vm2078, %v2001
  %2131 = vst.msk [vmem:[%s5 + $0xd0] sm:$0xf] %vm2078, %v2002
  %2132 = vst.msk [vmem:[%s5 + $0xd4] sm:$0xf] %vm2078, %v2003
  %2133 = vst.msk [vmem:[%s5 + $0xd8] sm:$0xf] %vm2078, %v2004
  %2134 = vst.msk [vmem:[%s5 + $0xdc] sm:$0xf] %vm2078, %v2005
  %2135 = vst.msk [vmem:[%s5 + $0xe0] sm:$0xf] %vm2078, %v2006
  %2136 = vst.msk [vmem:[%s5 + $0xe4] sm:$0xf] %vm2078, %v2007
  %2137 = vst.msk [vmem:[%s5 + $0xe8] sm:$0xf] %vm2078, %v2008
  %2138 = vst.msk [vmem:[%s5 + $0xec] sm:$0xf] %vm2078, %v2009
  %2139 = vst.msk [vmem:[%s5 + $0xf0] sm:$0xf] %vm2078, %v2010
  %2140 = vst.msk [vmem:[%s5 + $0xf4] sm:$0xf] %vm2078, %v2011
  %2141 = vst.msk [vmem:[%s5 + $0xf8] sm:$0xf] %vm2078, %v2012
  %2142 = vst.msk [vmem:[%s5 + $0xfc] sm:$0xf] %vm2078, %v2013
  // Predicated region
  $region22: #{run_patch_embed.1} parent=0 // pred_check
    _
  $region23: #{run_patch_embed.1} parent=0 // pred_check_branch
    %2144 = sbr.rel (0) target = $region25
  $region24: #{run_patch_embed.1} parent=0 // pred_region
    _
  $region25: #{run_patch_embed.1} parent=0 // pred_fallthru
    _
  // Predicated region
  $region26: #{run_patch_embed.1} parent=0 // pred_check
    _
  $region27: #{run_patch_embed.1} parent=0 // pred_check_branch
    %2146 = sbr.rel (0) target = $region29
  $region28: #{run_patch_embed.1} parent=0 // pred_region
    _
  $region29: #{run_patch_embed.1} parent=0 // pred_fallthru
    _

</llo_original>
